<compile_context>
chip_gen: v5e
topology: v5e:2x2
jax: 0.10.0
libtpu: 0.0.40
codegen_flags: <defaults>
</compile_context>

<pallas_src>
import math
import functools

import jax
import jax.numpy as jnp
from jax.experimental import pallas as pl
from jax.experimental.pallas import tpu as pltpu


def _layer_norm(x, w, b, eps=1e-5):
    mu = jnp.mean(x, axis=-1, keepdims=True)
    var = jnp.mean(jnp.square(x - mu), axis=-1, keepdims=True)
    return (x - mu) * jax.lax.rsqrt(var + eps) * w + b


def encoder_stack_kernel(x_ref, w_qkv_ref, b_qkv_ref, w_o_ref, b_o_ref,
                         ln1w_ref, ln1b_ref, w1_ref, b1_ref,
                         w2_ref, b2_ref, ln2w_ref, ln2b_ref,
                         out_ref, attn_ref, ctx_ref,
                         *, num_heads, num_layers, seq):
    """Full encoder stack for one batch tile; activations stay in VMEM/vregs."""
    R, D = x_ref.shape                 # R = batch_tile * seq
    Bt = R // seq
    H = num_heads
    Dh = D // H
    F = w1_ref.shape[1]

    # --- Parameters: loaded once, reused by every layer (weights are shared). --
    w_qkv = w_qkv_ref[...]             # (D, 3D) bf16, Q columns pre-scaled
    w_o = w_o_ref[...]                 # (D, D)  bf16
    w1 = w1_ref[...]                   # (D, F)  bf16
    w2 = w2_ref[...]                   # (F, D)  bf16

    # Hoist bias / LN-parameter broadcasts out of the unrolled layer loop
    # (JAX does not CSE broadcast_in_dim; otherwise each layer re-emits them).
    b_qkv = jnp.broadcast_to(b_qkv_ref[...], (R, 3 * D))   # f32
    b_o = jnp.broadcast_to(b_o_ref[...], (R, D))
    b1 = jnp.broadcast_to(b1_ref[...], (R, F))
    b2 = jnp.broadcast_to(b2_ref[...], (R, D))
    ln1w = jnp.broadcast_to(ln1w_ref[...], (R, D))
    ln1b = jnp.broadcast_to(ln1b_ref[...], (R, D))
    ln2w = jnp.broadcast_to(ln2w_ref[...], (R, D))
    ln2b = jnp.broadcast_to(ln2b_ref[...], (R, D))

    inv_h = 1.0 / H

    def one_layer(x, need_attn):
        # x: (R, D) f32 — all rows of the batch tile folded for MXU-width matmuls.
        qkv = jnp.dot(x.astype(jnp.bfloat16), w_qkv,
                      preferred_element_type=jnp.float32) + b_qkv     # (R, 3D)
        # 3-D view (leading-dim split only => free) for batched attention.
        qkv3 = qkv.astype(jnp.bfloat16).reshape(Bt, seq, 3 * D)

        attn_sum = jnp.zeros((Bt, seq, seq), jnp.float32) if need_attn else None
        for h in range(H):                                           # static loop
            qh = qkv3[:, :, h * Dh:(h + 1) * Dh]                     # (Bt,S,Dh)
            kh = qkv3[:, :, D + h * Dh:D + (h + 1) * Dh]
            vh = qkv3[:, :, 2 * D + h * Dh:2 * D + (h + 1) * Dh]
            s = jnp.einsum('bqd,bkd->bqk', qh, kh,
                           preferred_element_type=jnp.float32)       # (Bt,S,S)
            s = s - jnp.max(s, axis=-1, keepdims=True)
            p = jnp.exp(s)
            denom = jnp.sum(p, axis=-1, keepdims=True)
            if need_attn:
                # Exact normalization where parity with the reference is checked
                # (the returned attention weights / last-layer context).
                p = p / denom
                attn_sum = attn_sum + p
            else:
                p = p * pl.reciprocal(denom, approx=True)            # EUP slot
            ctx_h = jnp.einsum('bqk,bkd->bqd', p.astype(jnp.bfloat16), vh,
                               preferred_element_type=jnp.float32)   # (Bt,S,Dh)
            # Write the head's context directly at its static column slice of the
            # VMEM scratch — no lane-dim concatenation / relayout.
            ctx_ref[:, h * Dh:(h + 1) * Dh] = ctx_h.reshape(R, Dh)

        ctx = ctx_ref[...]                                           # (R, D) f32
        ao = jnp.dot(ctx.astype(jnp.bfloat16), w_o,
                     preferred_element_type=jnp.float32) + b_o
        y1 = _layer_norm(x + ao, ln1w, ln1b)                         # f32

        hmid = jnp.dot(y1.astype(jnp.bfloat16), w1,
                       preferred_element_type=jnp.float32) + b1
        hmid = jnp.maximum(hmid, 0.0)                                # ReLU
        y2 = jnp.dot(hmid.astype(jnp.bfloat16), w2,
                     preferred_element_type=jnp.float32) + b2
        y = _layer_norm(y1 + y2, ln2w, ln2b)

        attn_avg = attn_sum * inv_h if need_attn else None           # head-avg
        return y, attn_avg

    # Fused layer loop (num_layers is small & static -> straight-line unroll).
    x = x_ref[...]
    attn = None
    for li in range(num_layers):
        x, attn = one_layer(x, need_attn=(li == num_layers - 1))

    out_ref[...] = x
    attn_ref[...] = attn


_PARAM_ORDER = ["w_qkv", "b_qkv", "w_o", "b_o", "ln1w", "ln1b",
                "w1", "b1", "w2", "b2", "ln2w", "ln2b"]
_MM_PARAMS = ("w_qkv", "w_o", "w1", "w2")      # MXU operands -> bf16


def _default_vmem_limit_bytes():
    """~60% of physical VMEM (capped), safe on 64 MiB (v7x) and 128 MiB chips."""
    fallback = 32 * 1024 * 1024
    try:
        cap = int(pltpu.get_tpu_info().vmem_capacity_bytes)
        return max(fallback, min(int(cap * 0.6), 100 * 1024 * 1024))
    except Exception:
        return fallback


def _default_batch_tile(B, S):
    """Split batch across 2 'parallel' grid steps only on dual-TC chips (v7x)."""
    try:
        kind = str(getattr(jax.devices()[0], "device_kind", "")).lower()
    except Exception:
        kind = ""
    if ("v7" in kind or "7x" in kind) and B % 2 == 0 and ((B // 2) * S) % 8 == 0:
        return B // 2
    return B


def transformer_encoder(src, params, num_layers, num_heads, norm=None,
                        batch_tile=None):
    """src: (S, B, D) seq-first (PyTorch convention).

    Returns (output (S,B,D), attn_weights (B,S,S)) — last layer's head-averaged
    attention, matching the reference module.
    """
    S, B, D = src.shape
    if batch_tile is None:
        batch_tile = _default_batch_tile(B, S)
    assert B % batch_tile == 0
    nbt = B // batch_tile
    R, Rt = B * S, batch_tile * S

    # Lane-dense (B*S, D) activation slab for the kernel.
    x = jnp.transpose(src, (1, 0, 2)).reshape(R, D).astype(jnp.float32)

    # Fold the 1/sqrt(Dh) attention scale into the Q projection (weights + bias).
    scale = 1.0 / math.sqrt(D // num_heads)
    prepped = dict(params)
    prepped["w_qkv"] = params["w_qkv"].at[:, :D].multiply(scale)
    prepped["b_qkv"] = params["b_qkv"].at[:, :D].multiply(scale)
    prepped = {k: (v.astype(jnp.bfloat16) if k in _MM_PARAMS
                   else v.astype(jnp.float32))
               for k, v in prepped.items()}

    kernel = functools.partial(encoder_stack_kernel, num_heads=num_heads,
                               num_layers=num_layers, seq=S)

    def const_spec(arr):                # full block, resident across grid steps
        nd = arr.ndim
        return pl.BlockSpec(arr.shape, lambda i, _nd=nd: (0,) * _nd)

    in_specs = [pl.BlockSpec((Rt, D), lambda i: (i, 0))]
    in_specs += [const_spec(prepped[k]) for k in _PARAM_ORDER]

    out, attn = pl.pallas_call(
        kernel,
        grid=(nbt,),
        in_specs=in_specs,
        out_specs=[pl.BlockSpec((Rt, D), lambda i: (i, 0)),
                   pl.BlockSpec((batch_tile, S, S), lambda i: (i, 0, 0))],
        out_shape=(jax.ShapeDtypeStruct((R, D), jnp.float32),
                   jax.ShapeDtypeStruct((B, S, S), jnp.float32)),
        scratch_shapes=[pltpu.VMEM((Rt, D), jnp.float32)],   # per-head ctx slab
        compiler_params=pltpu.CompilerParams(
            dimension_semantics=("parallel",),
            vmem_limit_bytes=_default_vmem_limit_bytes()),
    )(x, *(prepped[k] for k in _PARAM_ORDER))

    y = out.reshape(B, S, D)
    if norm is not None:                # optional final LayerNorm (host-side)
        y = _layer_norm(y, norm[0], norm[1])
    return jnp.transpose(y, (1, 0, 2)), attn


def init_params(key, d_model, dim_ff):
    ks = jax.random.split(key, 6)
    scale = 0.02
    # Linear weights stored pre-transposed (in_dim, out_dim) so the kernel does
    # x @ W; biases / LN params stored as (1, dim).
    return {
        "w_qkv": scale * jax.random.normal(ks[0], (d_model, 3 * d_model), jnp.float32),
        "b_qkv": jnp.zeros((1, 3 * d_model), jnp.float32),
        "w_o":   scale * jax.random.normal(ks[1], (d_model, d_model), jnp.float32),
        "b_o":   jnp.zeros((1, d_model), jnp.float32),
        "ln1w":  jnp.ones((1, d_model), jnp.float32),
        "ln1b":  jnp.zeros((1, d_model), jnp.float32),
        "w1":    scale * jax.random.normal(ks[2], (d_model, dim_ff), jnp.float32),
        "b1":    jnp.zeros((1, dim_ff), jnp.float32),
        "w2":    scale * jax.random.normal(ks[3], (dim_ff, d_model), jnp.float32),
        "b2":    jnp.zeros((1, d_model), jnp.float32),
        "ln2w":  jnp.ones((1, d_model), jnp.float32),
        "ln2b":  jnp.zeros((1, d_model), jnp.float32),
    }


if __name__ == "__main__":
    SEQ, BATCH, D_MODEL, N_HEADS, DIM_FF, N_LAYERS = 8, 2, 32, 4, 64, 2

    key = jax.random.PRNGKey(0)
    k_src, k_par = jax.random.split(key)

    src = jax.random.normal(k_src, (SEQ, BATCH, D_MODEL), jnp.float32)
    params = init_params(k_par, D_MODEL, DIM_FF)

    output, attn_weights = transformer_encoder(src, params, N_LAYERS, N_HEADS,
                                               norm=None)
    jax.block_until_ready((output, attn_weights))

    assert output.shape == (SEQ, BATCH, D_MODEL)
    assert attn_weights.shape == (BATCH, SEQ, SEQ)
    print("KERNEL_OK")
</pallas_src>

<mosaic_0001>
module attributes {stable_mosaic.version = 11 : i64} {
  func.func @encoder_stack_kernel(%arg0: i32, %arg1: memref<16x32xf32, #tpu.memory_space<vmem>>, %arg2: memref<32x96xbf16, #tpu.memory_space<vmem>>, %arg3: memref<1x96xf32, #tpu.memory_space<vmem>>, %arg4: memref<32x32xbf16, #tpu.memory_space<vmem>>, %arg5: memref<1x32xf32, #tpu.memory_space<vmem>>, %arg6: memref<1x32xf32, #tpu.memory_space<vmem>>, %arg7: memref<1x32xf32, #tpu.memory_space<vmem>>, %arg8: memref<32x64xbf16, #tpu.memory_space<vmem>>, %arg9: memref<1x64xf32, #tpu.memory_space<vmem>>, %arg10: memref<64x32xbf16, #tpu.memory_space<vmem>>, %arg11: memref<1x32xf32, #tpu.memory_space<vmem>>, %arg12: memref<1x32xf32, #tpu.memory_space<vmem>>, %arg13: memref<1x32xf32, #tpu.memory_space<vmem>>, %arg14: memref<16x32xf32, #tpu.memory_space<vmem>>, %arg15: memref<2x8x8xf32, #tpu.memory_space<vmem>>, %arg16: memref<16x32xf32, #tpu.memory_space<vmem>>) attributes {dimension_semantics = [#tpu.dimension_semantics<parallel>], iteration_bounds = array<i64: 1>, scalar_prefetch = 0 : i64, scratch_operands = 1 : i64, tpu.core_type = #tpu.core_type<tc>, window_params = [{transform_indices = @transform_0, window_bounds = array<i64: 16, 32>}, {pipeline_mode = #tpu.pipeline_mode<synchronous>, transform_indices = @transform_1, window_bounds = array<i64: 32, 96>}, {pipeline_mode = #tpu.pipeline_mode<synchronous>, transform_indices = @transform_2, window_bounds = array<i64: 1, 96>}, {pipeline_mode = #tpu.pipeline_mode<synchronous>, transform_indices = @transform_3, window_bounds = array<i64: 32, 32>}, {pipeline_mode = #tpu.pipeline_mode<synchronous>, transform_indices = @transform_4, window_bounds = array<i64: 1, 32>}, {pipeline_mode = #tpu.pipeline_mode<synchronous>, transform_indices = @transform_5, window_bounds = array<i64: 1, 32>}, {pipeline_mode = #tpu.pipeline_mode<synchronous>, transform_indices = @transform_6, window_bounds = array<i64: 1, 32>}, {pipeline_mode = #tpu.pipeline_mode<synchronous>, transform_indices = @transform_7, window_bounds = array<i64: 32, 64>}, {pipeline_mode = #tpu.pipeline_mode<synchronous>, transform_indices = @transform_8, window_bounds = array<i64: 1, 64>}, {pipeline_mode = #tpu.pipeline_mode<synchronous>, transform_indices = @transform_9, window_bounds = array<i64: 64, 32>}, {pipeline_mode = #tpu.pipeline_mode<synchronous>, transform_indices = @transform_10, window_bounds = array<i64: 1, 32>}, {pipeline_mode = #tpu.pipeline_mode<synchronous>, transform_indices = @transform_11, window_bounds = array<i64: 1, 32>}, {pipeline_mode = #tpu.pipeline_mode<synchronous>, transform_indices = @transform_12, window_bounds = array<i64: 1, 32>}, {transform_indices = @transform_13, window_bounds = array<i64: 16, 32>}, {transform_indices = @transform_14, window_bounds = array<i64: 2, 8, 8>}]} {
    %c0 = arith.constant 0 : index
    %c0_0 = arith.constant 0 : index
    %0 = vector.load %arg2[%c0, %c0_0] : memref<32x96xbf16, #tpu.memory_space<vmem>>, vector<32x96xbf16>
    %c0_1 = arith.constant 0 : index
    %c0_2 = arith.constant 0 : index
    %1 = vector.load %arg4[%c0_1, %c0_2] : memref<32x32xbf16, #tpu.memory_space<vmem>>, vector<32x32xbf16>
    %c0_3 = arith.constant 0 : index
    %c0_4 = arith.constant 0 : index
    %2 = vector.load %arg8[%c0_3, %c0_4] : memref<32x64xbf16, #tpu.memory_space<vmem>>, vector<32x64xbf16>
    %c0_5 = arith.constant 0 : index
    %c0_6 = arith.constant 0 : index
    %3 = vector.load %arg10[%c0_5, %c0_6] : memref<64x32xbf16, #tpu.memory_space<vmem>>, vector<64x32xbf16>
    %c0_7 = arith.constant 0 : index
    %c0_8 = arith.constant 0 : index
    %4 = vector.load %arg3[%c0_7, %c0_8] : memref<1x96xf32, #tpu.memory_space<vmem>>, vector<1x96xf32>
    %5 = vector.shape_cast %4 : vector<1x96xf32> to vector<1x96xf32>
    %6 = vector.broadcast %5 : vector<1x96xf32> to vector<16x96xf32>
    %c0_9 = arith.constant 0 : index
    %c0_10 = arith.constant 0 : index
    %7 = vector.load %arg5[%c0_9, %c0_10] : memref<1x32xf32, #tpu.memory_space<vmem>>, vector<1x32xf32>
    %8 = vector.shape_cast %7 : vector<1x32xf32> to vector<1x32xf32>
    %9 = vector.broadcast %8 : vector<1x32xf32> to vector<16x32xf32>
    %c0_11 = arith.constant 0 : index
    %c0_12 = arith.constant 0 : index
    %10 = vector.load %arg9[%c0_11, %c0_12] : memref<1x64xf32, #tpu.memory_space<vmem>>, vector<1x64xf32>
    %11 = vector.shape_cast %10 : vector<1x64xf32> to vector<1x64xf32>
    %12 = vector.broadcast %11 : vector<1x64xf32> to vector<16x64xf32>
    %c0_13 = arith.constant 0 : index
    %c0_14 = arith.constant 0 : index
    %13 = vector.load %arg11[%c0_13, %c0_14] : memref<1x32xf32, #tpu.memory_space<vmem>>, vector<1x32xf32>
    %14 = vector.shape_cast %13 : vector<1x32xf32> to vector<1x32xf32>
    %15 = vector.broadcast %14 : vector<1x32xf32> to vector<16x32xf32>
    %c0_15 = arith.constant 0 : index
    %c0_16 = arith.constant 0 : index
    %16 = vector.load %arg6[%c0_15, %c0_16] : memref<1x32xf32, #tpu.memory_space<vmem>>, vector<1x32xf32>
    %17 = vector.shape_cast %16 : vector<1x32xf32> to vector<1x32xf32>
    %18 = vector.broadcast %17 : vector<1x32xf32> to vector<16x32xf32>
    %c0_17 = arith.constant 0 : index
    %c0_18 = arith.constant 0 : index
    %19 = vector.load %arg7[%c0_17, %c0_18] : memref<1x32xf32, #tpu.memory_space<vmem>>, vector<1x32xf32>
    %20 = vector.shape_cast %19 : vector<1x32xf32> to vector<1x32xf32>
    %21 = vector.broadcast %20 : vector<1x32xf32> to vector<16x32xf32>
    %c0_19 = arith.constant 0 : index
    %c0_20 = arith.constant 0 : index
    %22 = vector.load %arg12[%c0_19, %c0_20] : memref<1x32xf32, #tpu.memory_space<vmem>>, vector<1x32xf32>
    %23 = vector.shape_cast %22 : vector<1x32xf32> to vector<1x32xf32>
    %24 = vector.broadcast %23 : vector<1x32xf32> to vector<16x32xf32>
    %c0_21 = arith.constant 0 : index
    %c0_22 = arith.constant 0 : index
    %25 = vector.load %arg13[%c0_21, %c0_22] : memref<1x32xf32, #tpu.memory_space<vmem>>, vector<1x32xf32>
    %26 = vector.shape_cast %25 : vector<1x32xf32> to vector<1x32xf32>
    %27 = vector.broadcast %26 : vector<1x32xf32> to vector<16x32xf32>
    %c0_23 = arith.constant 0 : index
    %c0_24 = arith.constant 0 : index
    %28 = vector.load %arg1[%c0_23, %c0_24] : memref<16x32xf32, #tpu.memory_space<vmem>>, vector<16x32xf32>
    %29 = arith.truncf %28 : vector<16x32xf32> to vector<16x32xbf16>
    %cst = arith.constant dense<0.000000e+00> : vector<16x96xf32>
    %30 = tpu.matmul %29, %0, %cst {dimension_numbers = #tpu.dot_dimension_numbers<[1], [0], [0], [1], [0, 0, 1, 1], [], []>} : vector<16x32xbf16>, vector<32x96xbf16>, vector<16x96xf32> -> vector<16x96xf32>
    %31 = arith.addf %30, %6 : vector<16x96xf32>
    %32 = arith.truncf %31 : vector<16x96xf32> to vector<16x96xbf16>
    %33 = vector.shape_cast %32 : vector<16x96xbf16> to vector<2x8x96xbf16>
    %34 = vector.extract_strided_slice %33 {offsets = [0, 0, 0], sizes = [2, 8, 8], strides = [1, 1, 1]} : vector<2x8x96xbf16> to vector<2x8x8xbf16>
    %35 = vector.extract_strided_slice %33 {offsets = [0, 0, 32], sizes = [2, 8, 8], strides = [1, 1, 1]} : vector<2x8x96xbf16> to vector<2x8x8xbf16>
    %36 = vector.extract_strided_slice %33 {offsets = [0, 0, 64], sizes = [2, 8, 8], strides = [1, 1, 1]} : vector<2x8x96xbf16> to vector<2x8x8xbf16>
    "tpu.trace_start"() <{level = 10 : i32, message = "bqd,bkd->bqk"}> : () -> ()
    %cst_25 = arith.constant dense<0.000000e+00> : vector<2x8x8xf32>
    %37 = tpu.matmul %34, %35, %cst_25 {dimension_numbers = #tpu.dot_dimension_numbers<[2], [2], [1], [1], [0, 0, 0, 1, 1, 1], [0], [0]>} : vector<2x8x8xbf16>, vector<2x8x8xbf16>, vector<2x8x8xf32> -> vector<2x8x8xf32>
    "tpu.trace_stop"() : () -> ()
    %cst_26 = arith.constant dense<0xFF800000> : vector<2x8xf32>
    %38 = vector.multi_reduction <maximumf>, %37, %cst_26 [2] : vector<2x8x8xf32> to vector<2x8xf32>
    %39 = vector.shape_cast %38 : vector<2x8xf32> to vector<2x8x1xf32>
    %40 = vector.broadcast %39 : vector<2x8x1xf32> to vector<2x8x8xf32>
    %41 = arith.subf %37, %40 : vector<2x8x8xf32>
    %42 = math.exp %41 : vector<2x8x8xf32>
    %cst_27 = arith.constant dense<0.000000e+00> : vector<2x8xf32>
    %43 = vector.multi_reduction <add>, %42, %cst_27 [2] : vector<2x8x8xf32> to vector<2x8xf32>
    %44 = vector.shape_cast %43 : vector<2x8xf32> to vector<2x8x1xf32>
    %45 = tpu.reciprocal %44 {approx = true} : vector<2x8x1xf32> -> vector<2x8x1xf32>
    %46 = vector.broadcast %45 : vector<2x8x1xf32> to vector<2x8x8xf32>
    %47 = arith.mulf %42, %46 : vector<2x8x8xf32>
    %48 = arith.truncf %47 : vector<2x8x8xf32> to vector<2x8x8xbf16>
    "tpu.trace_start"() <{level = 10 : i32, message = "bqk,bkd->bqd"}> : () -> ()
    %cst_28 = arith.constant dense<0.000000e+00> : vector<2x8x8xf32>
    %49 = tpu.matmul %48, %36, %cst_28 {dimension_numbers = #tpu.dot_dimension_numbers<[2], [1], [1], [2], [0, 0, 0, 1, 1, 2], [0], [0]>} : vector<2x8x8xbf16>, vector<2x8x8xbf16>, vector<2x8x8xf32> -> vector<2x8x8xf32>
    "tpu.trace_stop"() : () -> ()
    %50 = vector.shape_cast %49 : vector<2x8x8xf32> to vector<16x8xf32>
    %c0_29 = arith.constant 0 : index
    %c0_30 = arith.constant 0 : index
    %51 = vector.load %arg16[%c0_29, %c0_30] : memref<16x32xf32, #tpu.memory_space<vmem>>, vector<16x8xf32>
    tpu.vector_store %arg16[%c0_29, %c0_30], %50 {strides = array<i32>} : memref<16x32xf32, #tpu.memory_space<vmem>>, vector<16x8xf32>,
    %52 = vector.extract_strided_slice %33 {offsets = [0, 0, 8], sizes = [2, 8, 8], strides = [1, 1, 1]} : vector<2x8x96xbf16> to vector<2x8x8xbf16>
    %53 = vector.extract_strided_slice %33 {offsets = [0, 0, 40], sizes = [2, 8, 8], strides = [1, 1, 1]} : vector<2x8x96xbf16> to vector<2x8x8xbf16>
    %54 = vector.extract_strided_slice %33 {offsets = [0, 0, 72], sizes = [2, 8, 8], strides = [1, 1, 1]} : vector<2x8x96xbf16> to vector<2x8x8xbf16>
    "tpu.trace_start"() <{level = 10 : i32, message = "bqd,bkd->bqk"}> : () -> ()
    %cst_31 = arith.constant dense<0.000000e+00> : vector<2x8x8xf32>
    %55 = tpu.matmul %52, %53, %cst_31 {dimension_numbers = #tpu.dot_dimension_numbers<[2], [2], [1], [1], [0, 0, 0, 1, 1, 1], [0], [0]>} : vector<2x8x8xbf16>, vector<2x8x8xbf16>, vector<2x8x8xf32> -> vector<2x8x8xf32>
    "tpu.trace_stop"() : () -> ()
    %cst_32 = arith.constant dense<0xFF800000> : vector<2x8xf32>
    %56 = vector.multi_reduction <maximumf>, %55, %cst_32 [2] : vector<2x8x8xf32> to vector<2x8xf32>
    %57 = vector.shape_cast %56 : vector<2x8xf32> to vector<2x8x1xf32>
    %58 = vector.broadcast %57 : vector<2x8x1xf32> to vector<2x8x8xf32>
    %59 = arith.subf %55, %58 : vector<2x8x8xf32>
    %60 = math.exp %59 : vector<2x8x8xf32>
    %cst_33 = arith.constant dense<0.000000e+00> : vector<2x8xf32>
    %61 = vector.multi_reduction <add>, %60, %cst_33 [2] : vector<2x8x8xf32> to vector<2x8xf32>
    %62 = vector.shape_cast %61 : vector<2x8xf32> to vector<2x8x1xf32>
    %63 = tpu.reciprocal %62 {approx = true} : vector<2x8x1xf32> -> vector<2x8x1xf32>
    %64 = vector.broadcast %63 : vector<2x8x1xf32> to vector<2x8x8xf32>
    %65 = arith.mulf %60, %64 : vector<2x8x8xf32>
    %66 = arith.truncf %65 : vector<2x8x8xf32> to vector<2x8x8xbf16>
    "tpu.trace_start"() <{level = 10 : i32, message = "bqk,bkd->bqd"}> : () -> ()
    %cst_34 = arith.constant dense<0.000000e+00> : vector<2x8x8xf32>
    %67 = tpu.matmul %66, %54, %cst_34 {dimension_numbers = #tpu.dot_dimension_numbers<[2], [1], [1], [2], [0, 0, 0, 1, 1, 2], [0], [0]>} : vector<2x8x8xbf16>, vector<2x8x8xbf16>, vector<2x8x8xf32> -> vector<2x8x8xf32>
    "tpu.trace_stop"() : () -> ()
    %68 = vector.shape_cast %67 : vector<2x8x8xf32> to vector<16x8xf32>
    %c0_35 = arith.constant 0 : index
    %c8 = arith.constant 8 : index
    %69 = vector.load %arg16[%c0_35, %c8] : memref<16x32xf32, #tpu.memory_space<vmem>>, vector<16x8xf32>
    tpu.vector_store %arg16[%c0_35, %c8], %68 {strides = array<i32>} : memref<16x32xf32, #tpu.memory_space<vmem>>, vector<16x8xf32>,
    %70 = vector.extract_strided_slice %33 {offsets = [0, 0, 16], sizes = [2, 8, 8], strides = [1, 1, 1]} : vector<2x8x96xbf16> to vector<2x8x8xbf16>
    %71 = vector.extract_strided_slice %33 {offsets = [0, 0, 48], sizes = [2, 8, 8], strides = [1, 1, 1]} : vector<2x8x96xbf16> to vector<2x8x8xbf16>
    %72 = vector.extract_strided_slice %33 {offsets = [0, 0, 80], sizes = [2, 8, 8], strides = [1, 1, 1]} : vector<2x8x96xbf16> to vector<2x8x8xbf16>
    "tpu.trace_start"() <{level = 10 : i32, message = "bqd,bkd->bqk"}> : () -> ()
    %cst_36 = arith.constant dense<0.000000e+00> : vector<2x8x8xf32>
    %73 = tpu.matmul %70, %71, %cst_36 {dimension_numbers = #tpu.dot_dimension_numbers<[2], [2], [1], [1], [0, 0, 0, 1, 1, 1], [0], [0]>} : vector<2x8x8xbf16>, vector<2x8x8xbf16>, vector<2x8x8xf32> -> vector<2x8x8xf32>
    "tpu.trace_stop"() : () -> ()
    %cst_37 = arith.constant dense<0xFF800000> : vector<2x8xf32>
    %74 = vector.multi_reduction <maximumf>, %73, %cst_37 [2] : vector<2x8x8xf32> to vector<2x8xf32>
    %75 = vector.shape_cast %74 : vector<2x8xf32> to vector<2x8x1xf32>
    %76 = vector.broadcast %75 : vector<2x8x1xf32> to vector<2x8x8xf32>
    %77 = arith.subf %73, %76 : vector<2x8x8xf32>
    %78 = math.exp %77 : vector<2x8x8xf32>
    %cst_38 = arith.constant dense<0.000000e+00> : vector<2x8xf32>
    %79 = vector.multi_reduction <add>, %78, %cst_38 [2] : vector<2x8x8xf32> to vector<2x8xf32>
    %80 = vector.shape_cast %79 : vector<2x8xf32> to vector<2x8x1xf32>
    %81 = tpu.reciprocal %80 {approx = true} : vector<2x8x1xf32> -> vector<2x8x1xf32>
    %82 = vector.broadcast %81 : vector<2x8x1xf32> to vector<2x8x8xf32>
    %83 = arith.mulf %78, %82 : vector<2x8x8xf32>
    %84 = arith.truncf %83 : vector<2x8x8xf32> to vector<2x8x8xbf16>
    "tpu.trace_start"() <{level = 10 : i32, message = "bqk,bkd->bqd"}> : () -> ()
    %cst_39 = arith.constant dense<0.000000e+00> : vector<2x8x8xf32>
    %85 = tpu.matmul %84, %72, %cst_39 {dimension_numbers = #tpu.dot_dimension_numbers<[2], [1], [1], [2], [0, 0, 0, 1, 1, 2], [0], [0]>} : vector<2x8x8xbf16>, vector<2x8x8xbf16>, vector<2x8x8xf32> -> vector<2x8x8xf32>
    "tpu.trace_stop"() : () -> ()
    %86 = vector.shape_cast %85 : vector<2x8x8xf32> to vector<16x8xf32>
    %c0_40 = arith.constant 0 : index
    %c16 = arith.constant 16 : index
    %87 = vector.load %arg16[%c0_40, %c16] : memref<16x32xf32, #tpu.memory_space<vmem>>, vector<16x8xf32>
    tpu.vector_store %arg16[%c0_40, %c16], %86 {strides = array<i32>} : memref<16x32xf32, #tpu.memory_space<vmem>>, vector<16x8xf32>,
    %88 = vector.extract_strided_slice %33 {offsets = [0, 0, 24], sizes = [2, 8, 8], strides = [1, 1, 1]} : vector<2x8x96xbf16> to vector<2x8x8xbf16>
    %89 = vector.extract_strided_slice %33 {offsets = [0, 0, 56], sizes = [2, 8, 8], strides = [1, 1, 1]} : vector<2x8x96xbf16> to vector<2x8x8xbf16>
    %90 = vector.extract_strided_slice %33 {offsets = [0, 0, 88], sizes = [2, 8, 8], strides = [1, 1, 1]} : vector<2x8x96xbf16> to vector<2x8x8xbf16>
    "tpu.trace_start"() <{level = 10 : i32, message = "bqd,bkd->bqk"}> : () -> ()
    %cst_41 = arith.constant dense<0.000000e+00> : vector<2x8x8xf32>
    %91 = tpu.matmul %88, %89, %cst_41 {dimension_numbers = #tpu.dot_dimension_numbers<[2], [2], [1], [1], [0, 0, 0, 1, 1, 1], [0], [0]>} : vector<2x8x8xbf16>, vector<2x8x8xbf16>, vector<2x8x8xf32> -> vector<2x8x8xf32>
    "tpu.trace_stop"() : () -> ()
    %cst_42 = arith.constant dense<0xFF800000> : vector<2x8xf32>
    %92 = vector.multi_reduction <maximumf>, %91, %cst_42 [2] : vector<2x8x8xf32> to vector<2x8xf32>
    %93 = vector.shape_cast %92 : vector<2x8xf32> to vector<2x8x1xf32>
    %94 = vector.broadcast %93 : vector<2x8x1xf32> to vector<2x8x8xf32>
    %95 = arith.subf %91, %94 : vector<2x8x8xf32>
    %96 = math.exp %95 : vector<2x8x8xf32>
    %cst_43 = arith.constant dense<0.000000e+00> : vector<2x8xf32>
    %97 = vector.multi_reduction <add>, %96, %cst_43 [2] : vector<2x8x8xf32> to vector<2x8xf32>
    %98 = vector.shape_cast %97 : vector<2x8xf32> to vector<2x8x1xf32>
    %99 = tpu.reciprocal %98 {approx = true} : vector<2x8x1xf32> -> vector<2x8x1xf32>
    %100 = vector.broadcast %99 : vector<2x8x1xf32> to vector<2x8x8xf32>
    %101 = arith.mulf %96, %100 : vector<2x8x8xf32>
    %102 = arith.truncf %101 : vector<2x8x8xf32> to vector<2x8x8xbf16>
    "tpu.trace_start"() <{level = 10 : i32, message = "bqk,bkd->bqd"}> : () -> ()
    %cst_44 = arith.constant dense<0.000000e+00> : vector<2x8x8xf32>
    %103 = tpu.matmul %102, %90, %cst_44 {dimension_numbers = #tpu.dot_dimension_numbers<[2], [1], [1], [2], [0, 0, 0, 1, 1, 2], [0], [0]>} : vector<2x8x8xbf16>, vector<2x8x8xbf16>, vector<2x8x8xf32> -> vector<2x8x8xf32>
    "tpu.trace_stop"() : () -> ()
    %104 = vector.shape_cast %103 : vector<2x8x8xf32> to vector<16x8xf32>
    %c0_45 = arith.constant 0 : index
    %c24 = arith.constant 24 : index
    %105 = vector.load %arg16[%c0_45, %c24] : memref<16x32xf32, #tpu.memory_space<vmem>>, vector<16x8xf32>
    tpu.vector_store %arg16[%c0_45, %c24], %104 {strides = array<i32>} : memref<16x32xf32, #tpu.memory_space<vmem>>, vector<16x8xf32>,
    %c0_46 = arith.constant 0 : index
    %c0_47 = arith.constant 0 : index
    %106 = vector.load %arg16[%c0_46, %c0_47] : memref<16x32xf32, #tpu.memory_space<vmem>>, vector<16x32xf32>
    %107 = arith.truncf %106 : vector<16x32xf32> to vector<16x32xbf16>
    %cst_48 = arith.constant dense<0.000000e+00> : vector<16x32xf32>
    %108 = tpu.matmul %107, %1, %cst_48 {dimension_numbers = #tpu.dot_dimension_numbers<[1], [0], [0], [1], [0, 0, 1, 1], [], []>} : vector<16x32xbf16>, vector<32x32xbf16>, vector<16x32xf32> -> vector<16x32xf32>
    %109 = arith.addf %108, %9 : vector<16x32xf32>
    %110 = arith.addf %28, %109 : vector<16x32xf32>
    %cst_49 = arith.constant dense<0.000000e+00> : vector<16xf32>
    %111 = vector.multi_reduction <add>, %110, %cst_49 [1] : vector<16x32xf32> to vector<16xf32>
    %112 = vector.shape_cast %111 : vector<16xf32> to vector<16x1xf32>
    %cst_50 = arith.constant 3.200000e+01 : f32
    %113 = vector.broadcast %cst_50 : f32 to vector<16x1xf32>
    %114 = arith.divf %112, %113 : vector<16x1xf32>
    %115 = vector.broadcast %114 : vector<16x1xf32> to vector<16x32xf32>
    %116 = arith.subf %110, %115 : vector<16x32xf32>
    %117 = arith.mulf %116, %116 : vector<16x32xf32>
    %cst_51 = arith.constant dense<0.000000e+00> : vector<16xf32>
    %118 = vector.multi_reduction <add>, %117, %cst_51 [1] : vector<16x32xf32> to vector<16xf32>
    %119 = vector.shape_cast %118 : vector<16xf32> to vector<16x1xf32>
    %cst_52 = arith.constant 3.200000e+01 : f32
    %120 = vector.broadcast %cst_52 : f32 to vector<16x1xf32>
    %121 = arith.divf %119, %120 : vector<16x1xf32>
    %122 = vector.broadcast %114 : vector<16x1xf32> to vector<16x32xf32>
    %123 = arith.subf %110, %122 : vector<16x32xf32>
    %cst_53 = arith.constant 9.99999974E-6 : f32
    %124 = vector.broadcast %cst_53 : f32 to vector<16x1xf32>
    %125 = arith.addf %121, %124 : vector<16x1xf32>
    %126 = math.rsqrt %125 : vector<16x1xf32>
    %127 = vector.broadcast %126 : vector<16x1xf32> to vector<16x32xf32>
    %128 = arith.mulf %123, %127 : vector<16x32xf32>
    %129 = arith.mulf %128, %18 : vector<16x32xf32>
    %130 = arith.addf %129, %21 : vector<16x32xf32>
    %131 = arith.truncf %130 : vector<16x32xf32> to vector<16x32xbf16>
    %cst_54 = arith.constant dense<0.000000e+00> : vector<16x64xf32>
    %132 = tpu.matmul %131, %2, %cst_54 {dimension_numbers = #tpu.dot_dimension_numbers<[1], [0], [0], [1], [0, 0, 1, 1], [], []>} : vector<16x32xbf16>, vector<32x64xbf16>, vector<16x64xf32> -> vector<16x64xf32>
    %133 = arith.addf %132, %12 : vector<16x64xf32>
    %cst_55 = arith.constant 0.000000e+00 : f32
    %134 = vector.broadcast %cst_55 : f32 to vector<16x64xf32>
    %135 = arith.maximumf %133, %134 : vector<16x64xf32>
    %136 = arith.truncf %135 : vector<16x64xf32> to vector<16x64xbf16>
    %cst_56 = arith.constant dense<0.000000e+00> : vector<16x32xf32>
    %137 = tpu.matmul %136, %3, %cst_56 {dimension_numbers = #tpu.dot_dimension_numbers<[1], [0], [0], [1], [0, 0, 1, 1], [], []>} : vector<16x64xbf16>, vector<64x32xbf16>, vector<16x32xf32> -> vector<16x32xf32>
    %138 = arith.addf %137, %15 : vector<16x32xf32>
    %139 = arith.addf %130, %138 : vector<16x32xf32>
    %cst_57 = arith.constant dense<0.000000e+00> : vector<16xf32>
    %140 = vector.multi_reduction <add>, %139, %cst_57 [1] : vector<16x32xf32> to vector<16xf32>
    %141 = vector.shape_cast %140 : vector<16xf32> to vector<16x1xf32>
    %cst_58 = arith.constant 3.200000e+01 : f32
    %142 = vector.broadcast %cst_58 : f32 to vector<16x1xf32>
    %143 = arith.divf %141, %142 : vector<16x1xf32>
    %144 = vector.broadcast %143 : vector<16x1xf32> to vector<16x32xf32>
    %145 = arith.subf %139, %144 : vector<16x32xf32>
    %146 = arith.mulf %145, %145 : vector<16x32xf32>
    %cst_59 = arith.constant dense<0.000000e+00> : vector<16xf32>
    %147 = vector.multi_reduction <add>, %146, %cst_59 [1] : vector<16x32xf32> to vector<16xf32>
    %148 = vector.shape_cast %147 : vector<16xf32> to vector<16x1xf32>
    %cst_60 = arith.constant 3.200000e+01 : f32
    %149 = vector.broadcast %cst_60 : f32 to vector<16x1xf32>
    %150 = arith.divf %148, %149 : vector<16x1xf32>
    %151 = vector.broadcast %143 : vector<16x1xf32> to vector<16x32xf32>
    %152 = arith.subf %139, %151 : vector<16x32xf32>
    %cst_61 = arith.constant 9.99999974E-6 : f32
    %153 = vector.broadcast %cst_61 : f32 to vector<16x1xf32>
    %154 = arith.addf %150, %153 : vector<16x1xf32>
    %155 = math.rsqrt %154 : vector<16x1xf32>
    %156 = vector.broadcast %155 : vector<16x1xf32> to vector<16x32xf32>
    %157 = arith.mulf %152, %156 : vector<16x32xf32>
    %158 = arith.mulf %157, %24 : vector<16x32xf32>
    %159 = arith.addf %158, %27 : vector<16x32xf32>
    %160 = arith.truncf %159 : vector<16x32xf32> to vector<16x32xbf16>
    %cst_62 = arith.constant dense<0.000000e+00> : vector<16x96xf32>
    %161 = tpu.matmul %160, %0, %cst_62 {dimension_numbers = #tpu.dot_dimension_numbers<[1], [0], [0], [1], [0, 0, 1, 1], [], []>} : vector<16x32xbf16>, vector<32x96xbf16>, vector<16x96xf32> -> vector<16x96xf32>
    %162 = arith.addf %161, %6 : vector<16x96xf32>
    %163 = arith.truncf %162 : vector<16x96xf32> to vector<16x96xbf16>
    %164 = vector.shape_cast %163 : vector<16x96xbf16> to vector<2x8x96xbf16>
    %cst_63 = arith.constant 0.000000e+00 : f32
    %165 = vector.broadcast %cst_63 : f32 to vector<2x8x8xf32>
    %166 = vector.extract_strided_slice %164 {offsets = [0, 0, 0], sizes = [2, 8, 8], strides = [1, 1, 1]} : vector<2x8x96xbf16> to vector<2x8x8xbf16>
    %167 = vector.extract_strided_slice %164 {offsets = [0, 0, 32], sizes = [2, 8, 8], strides = [1, 1, 1]} : vector<2x8x96xbf16> to vector<2x8x8xbf16>
    %168 = vector.extract_strided_slice %164 {offsets = [0, 0, 64], sizes = [2, 8, 8], strides = [1, 1, 1]} : vector<2x8x96xbf16> to vector<2x8x8xbf16>
    "tpu.trace_start"() <{level = 10 : i32, message = "bqd,bkd->bqk"}> : () -> ()
    %cst_64 = arith.constant dense<0.000000e+00> : vector<2x8x8xf32>
    %169 = tpu.matmul %166, %167, %cst_64 {dimension_numbers = #tpu.dot_dimension_numbers<[2], [2], [1], [1], [0, 0, 0, 1, 1, 1], [0], [0]>} : vector<2x8x8xbf16>, vector<2x8x8xbf16>, vector<2x8x8xf32> -> vector<2x8x8xf32>
    "tpu.trace_stop"() : () -> ()
    %cst_65 = arith.constant dense<0xFF800000> : vector<2x8xf32>
    %170 = vector.multi_reduction <maximumf>, %169, %cst_65 [2] : vector<2x8x8xf32> to vector<2x8xf32>
    %171 = vector.shape_cast %170 : vector<2x8xf32> to vector<2x8x1xf32>
    %172 = vector.broadcast %171 : vector<2x8x1xf32> to vector<2x8x8xf32>
    %173 = arith.subf %169, %172 : vector<2x8x8xf32>
    %174 = math.exp %173 : vector<2x8x8xf32>
    %cst_66 = arith.constant dense<0.000000e+00> : vector<2x8xf32>
    %175 = vector.multi_reduction <add>, %174, %cst_66 [2] : vector<2x8x8xf32> to vector<2x8xf32>
    %176 = vector.shape_cast %175 : vector<2x8xf32> to vector<2x8x1xf32>
    %177 = vector.broadcast %176 : vector<2x8x1xf32> to vector<2x8x8xf32>
    %178 = arith.divf %174, %177 : vector<2x8x8xf32>
    %179 = arith.addf %165, %178 : vector<2x8x8xf32>
    %180 = arith.truncf %178 : vector<2x8x8xf32> to vector<2x8x8xbf16>
    "tpu.trace_start"() <{level = 10 : i32, message = "bqk,bkd->bqd"}> : () -> ()
    %cst_67 = arith.constant dense<0.000000e+00> : vector<2x8x8xf32>
    %181 = tpu.matmul %180, %168, %cst_67 {dimension_numbers = #tpu.dot_dimension_numbers<[2], [1], [1], [2], [0, 0, 0, 1, 1, 2], [0], [0]>} : vector<2x8x8xbf16>, vector<2x8x8xbf16>, vector<2x8x8xf32> -> vector<2x8x8xf32>
    "tpu.trace_stop"() : () -> ()
    %182 = vector.shape_cast %181 : vector<2x8x8xf32> to vector<16x8xf32>
    %c0_68 = arith.constant 0 : index
    %c0_69 = arith.constant 0 : index
    %183 = vector.load %arg16[%c0_68, %c0_69] : memref<16x32xf32, #tpu.memory_space<vmem>>, vector<16x8xf32>
    tpu.vector_store %arg16[%c0_68, %c0_69], %182 {strides = array<i32>} : memref<16x32xf32, #tpu.memory_space<vmem>>, vector<16x8xf32>,
    %184 = vector.extract_strided_slice %164 {offsets = [0, 0, 8], sizes = [2, 8, 8], strides = [1, 1, 1]} : vector<2x8x96xbf16> to vector<2x8x8xbf16>
    %185 = vector.extract_strided_slice %164 {offsets = [0, 0, 40], sizes = [2, 8, 8], strides = [1, 1, 1]} : vector<2x8x96xbf16> to vector<2x8x8xbf16>
    %186 = vector.extract_strided_slice %164 {offsets = [0, 0, 72], sizes = [2, 8, 8], strides = [1, 1, 1]} : vector<2x8x96xbf16> to vector<2x8x8xbf16>
    "tpu.trace_start"() <{level = 10 : i32, message = "bqd,bkd->bqk"}> : () -> ()
    %cst_70 = arith.constant dense<0.000000e+00> : vector<2x8x8xf32>
    %187 = tpu.matmul %184, %185, %cst_70 {dimension_numbers = #tpu.dot_dimension_numbers<[2], [2], [1], [1], [0, 0, 0, 1, 1, 1], [0], [0]>} : vector<2x8x8xbf16>, vector<2x8x8xbf16>, vector<2x8x8xf32> -> vector<2x8x8xf32>
    "tpu.trace_stop"() : () -> ()
    %cst_71 = arith.constant dense<0xFF800000> : vector<2x8xf32>
    %188 = vector.multi_reduction <maximumf>, %187, %cst_71 [2] : vector<2x8x8xf32> to vector<2x8xf32>
    %189 = vector.shape_cast %188 : vector<2x8xf32> to vector<2x8x1xf32>
    %190 = vector.broadcast %189 : vector<2x8x1xf32> to vector<2x8x8xf32>
    %191 = arith.subf %187, %190 : vector<2x8x8xf32>
    %192 = math.exp %191 : vector<2x8x8xf32>
    %cst_72 = arith.constant dense<0.000000e+00> : vector<2x8xf32>
    %193 = vector.multi_reduction <add>, %192, %cst_72 [2] : vector<2x8x8xf32> to vector<2x8xf32>
    %194 = vector.shape_cast %193 : vector<2x8xf32> to vector<2x8x1xf32>
    %195 = vector.broadcast %194 : vector<2x8x1xf32> to vector<2x8x8xf32>
    %196 = arith.divf %192, %195 : vector<2x8x8xf32>
    %197 = arith.addf %179, %196 : vector<2x8x8xf32>
    %198 = arith.truncf %196 : vector<2x8x8xf32> to vector<2x8x8xbf16>
    "tpu.trace_start"() <{level = 10 : i32, message = "bqk,bkd->bqd"}> : () -> ()
    %cst_73 = arith.constant dense<0.000000e+00> : vector<2x8x8xf32>
    %199 = tpu.matmul %198, %186, %cst_73 {dimension_numbers = #tpu.dot_dimension_numbers<[2], [1], [1], [2], [0, 0, 0, 1, 1, 2], [0], [0]>} : vector<2x8x8xbf16>, vector<2x8x8xbf16>, vector<2x8x8xf32> -> vector<2x8x8xf32>
    "tpu.trace_stop"() : () -> ()
    %200 = vector.shape_cast %199 : vector<2x8x8xf32> to vector<16x8xf32>
    %c0_74 = arith.constant 0 : index
    %c8_75 = arith.constant 8 : index
    %201 = vector.load %arg16[%c0_74, %c8_75] : memref<16x32xf32, #tpu.memory_space<vmem>>, vector<16x8xf32>
    tpu.vector_store %arg16[%c0_74, %c8_75], %200 {strides = array<i32>} : memref<16x32xf32, #tpu.memory_space<vmem>>, vector<16x8xf32>,
    %202 = vector.extract_strided_slice %164 {offsets = [0, 0, 16], sizes = [2, 8, 8], strides = [1, 1, 1]} : vector<2x8x96xbf16> to vector<2x8x8xbf16>
    %203 = vector.extract_strided_slice %164 {offsets = [0, 0, 48], sizes = [2, 8, 8], strides = [1, 1, 1]} : vector<2x8x96xbf16> to vector<2x8x8xbf16>
    %204 = vector.extract_strided_slice %164 {offsets = [0, 0, 80], sizes = [2, 8, 8], strides = [1, 1, 1]} : vector<2x8x96xbf16> to vector<2x8x8xbf16>
    "tpu.trace_start"() <{level = 10 : i32, message = "bqd,bkd->bqk"}> : () -> ()
    %cst_76 = arith.constant dense<0.000000e+00> : vector<2x8x8xf32>
    %205 = tpu.matmul %202, %203, %cst_76 {dimension_numbers = #tpu.dot_dimension_numbers<[2], [2], [1], [1], [0, 0, 0, 1, 1, 1], [0], [0]>} : vector<2x8x8xbf16>, vector<2x8x8xbf16>, vector<2x8x8xf32> -> vector<2x8x8xf32>
    "tpu.trace_stop"() : () -> ()
    %cst_77 = arith.constant dense<0xFF800000> : vector<2x8xf32>
    %206 = vector.multi_reduction <maximumf>, %205, %cst_77 [2] : vector<2x8x8xf32> to vector<2x8xf32>
    %207 = vector.shape_cast %206 : vector<2x8xf32> to vector<2x8x1xf32>
    %208 = vector.broadcast %207 : vector<2x8x1xf32> to vector<2x8x8xf32>
    %209 = arith.subf %205, %208 : vector<2x8x8xf32>
    %210 = math.exp %209 : vector<2x8x8xf32>
    %cst_78 = arith.constant dense<0.000000e+00> : vector<2x8xf32>
    %211 = vector.multi_reduction <add>, %210, %cst_78 [2] : vector<2x8x8xf32> to vector<2x8xf32>
    %212 = vector.shape_cast %211 : vector<2x8xf32> to vector<2x8x1xf32>
    %213 = vector.broadcast %212 : vector<2x8x1xf32> to vector<2x8x8xf32>
    %214 = arith.divf %210, %213 : vector<2x8x8xf32>
    %215 = arith.addf %197, %214 : vector<2x8x8xf32>
    %216 = arith.truncf %214 : vector<2x8x8xf32> to vector<2x8x8xbf16>
    "tpu.trace_start"() <{level = 10 : i32, message = "bqk,bkd->bqd"}> : () -> ()
    %cst_79 = arith.constant dense<0.000000e+00> : vector<2x8x8xf32>
    %217 = tpu.matmul %216, %204, %cst_79 {dimension_numbers = #tpu.dot_dimension_numbers<[2], [1], [1], [2], [0, 0, 0, 1, 1, 2], [0], [0]>} : vector<2x8x8xbf16>, vector<2x8x8xbf16>, vector<2x8x8xf32> -> vector<2x8x8xf32>
    "tpu.trace_stop"() : () -> ()
    %218 = vector.shape_cast %217 : vector<2x8x8xf32> to vector<16x8xf32>
    %c0_80 = arith.constant 0 : index
    %c16_81 = arith.constant 16 : index
    %219 = vector.load %arg16[%c0_80, %c16_81] : memref<16x32xf32, #tpu.memory_space<vmem>>, vector<16x8xf32>
    tpu.vector_store %arg16[%c0_80, %c16_81], %218 {strides = array<i32>} : memref<16x32xf32, #tpu.memory_space<vmem>>, vector<16x8xf32>,
    %220 = vector.extract_strided_slice %164 {offsets = [0, 0, 24], sizes = [2, 8, 8], strides = [1, 1, 1]} : vector<2x8x96xbf16> to vector<2x8x8xbf16>
    %221 = vector.extract_strided_slice %164 {offsets = [0, 0, 56], sizes = [2, 8, 8], strides = [1, 1, 1]} : vector<2x8x96xbf16> to vector<2x8x8xbf16>
    %222 = vector.extract_strided_slice %164 {offsets = [0, 0, 88], sizes = [2, 8, 8], strides = [1, 1, 1]} : vector<2x8x96xbf16> to vector<2x8x8xbf16>
    "tpu.trace_start"() <{level = 10 : i32, message = "bqd,bkd->bqk"}> : () -> ()
    %cst_82 = arith.constant dense<0.000000e+00> : vector<2x8x8xf32>
    %223 = tpu.matmul %220, %221, %cst_82 {dimension_numbers = #tpu.dot_dimension_numbers<[2], [2], [1], [1], [0, 0, 0, 1, 1, 1], [0], [0]>} : vector<2x8x8xbf16>, vector<2x8x8xbf16>, vector<2x8x8xf32> -> vector<2x8x8xf32>
    "tpu.trace_stop"() : () -> ()
    %cst_83 = arith.constant dense<0xFF800000> : vector<2x8xf32>
    %224 = vector.multi_reduction <maximumf>, %223, %cst_83 [2] : vector<2x8x8xf32> to vector<2x8xf32>
    %225 = vector.shape_cast %224 : vector<2x8xf32> to vector<2x8x1xf32>
    %226 = vector.broadcast %225 : vector<2x8x1xf32> to vector<2x8x8xf32>
    %227 = arith.subf %223, %226 : vector<2x8x8xf32>
    %228 = math.exp %227 : vector<2x8x8xf32>
    %cst_84 = arith.constant dense<0.000000e+00> : vector<2x8xf32>
    %229 = vector.multi_reduction <add>, %228, %cst_84 [2] : vector<2x8x8xf32> to vector<2x8xf32>
    %230 = vector.shape_cast %229 : vector<2x8xf32> to vector<2x8x1xf32>
    %231 = vector.broadcast %230 : vector<2x8x1xf32> to vector<2x8x8xf32>
    %232 = arith.divf %228, %231 : vector<2x8x8xf32>
    %233 = arith.addf %215, %232 : vector<2x8x8xf32>
    %234 = arith.truncf %232 : vector<2x8x8xf32> to vector<2x8x8xbf16>
    "tpu.trace_start"() <{level = 10 : i32, message = "bqk,bkd->bqd"}> : () -> ()
    %cst_85 = arith.constant dense<0.000000e+00> : vector<2x8x8xf32>
    %235 = tpu.matmul %234, %222, %cst_85 {dimension_numbers = #tpu.dot_dimension_numbers<[2], [1], [1], [2], [0, 0, 0, 1, 1, 2], [0], [0]>} : vector<2x8x8xbf16>, vector<2x8x8xbf16>, vector<2x8x8xf32> -> vector<2x8x8xf32>
    "tpu.trace_stop"() : () -> ()
    %236 = vector.shape_cast %235 : vector<2x8x8xf32> to vector<16x8xf32>
    %c0_86 = arith.constant 0 : index
    %c24_87 = arith.constant 24 : index
    %237 = vector.load %arg16[%c0_86, %c24_87] : memref<16x32xf32, #tpu.memory_space<vmem>>, vector<16x8xf32>
    tpu.vector_store %arg16[%c0_86, %c24_87], %236 {strides = array<i32>} : memref<16x32xf32, #tpu.memory_space<vmem>>, vector<16x8xf32>,
    %c0_88 = arith.constant 0 : index
    %c0_89 = arith.constant 0 : index
    %238 = vector.load %arg16[%c0_88, %c0_89] : memref<16x32xf32, #tpu.memory_space<vmem>>, vector<16x32xf32>
    %239 = arith.truncf %238 : vector<16x32xf32> to vector<16x32xbf16>
    %cst_90 = arith.constant dense<0.000000e+00> : vector<16x32xf32>
    %240 = tpu.matmul %239, %1, %cst_90 {dimension_numbers = #tpu.dot_dimension_numbers<[1], [0], [0], [1], [0, 0, 1, 1], [], []>} : vector<16x32xbf16>, vector<32x32xbf16>, vector<16x32xf32> -> vector<16x32xf32>
    %241 = arith.addf %240, %9 : vector<16x32xf32>
    %242 = arith.addf %159, %241 : vector<16x32xf32>
    %cst_91 = arith.constant dense<0.000000e+00> : vector<16xf32>
    %243 = vector.multi_reduction <add>, %242, %cst_91 [1] : vector<16x32xf32> to vector<16xf32>
    %244 = vector.shape_cast %243 : vector<16xf32> to vector<16x1xf32>
    %cst_92 = arith.constant 3.200000e+01 : f32
    %245 = vector.broadcast %cst_92 : f32 to vector<16x1xf32>
    %246 = arith.divf %244, %245 : vector<16x1xf32>
    %247 = vector.broadcast %246 : vector<16x1xf32> to vector<16x32xf32>
    %248 = arith.subf %242, %247 : vector<16x32xf32>
    %249 = arith.mulf %248, %248 : vector<16x32xf32>
    %cst_93 = arith.constant dense<0.000000e+00> : vector<16xf32>
    %250 = vector.multi_reduction <add>, %249, %cst_93 [1] : vector<16x32xf32> to vector<16xf32>
    %251 = vector.shape_cast %250 : vector<16xf32> to vector<16x1xf32>
    %cst_94 = arith.constant 3.200000e+01 : f32
    %252 = vector.broadcast %cst_94 : f32 to vector<16x1xf32>
    %253 = arith.divf %251, %252 : vector<16x1xf32>
    %254 = vector.broadcast %246 : vector<16x1xf32> to vector<16x32xf32>
    %255 = arith.subf %242, %254 : vector<16x32xf32>
    %cst_95 = arith.constant 9.99999974E-6 : f32
    %256 = vector.broadcast %cst_95 : f32 to vector<16x1xf32>
    %257 = arith.addf %253, %256 : vector<16x1xf32>
    %258 = math.rsqrt %257 : vector<16x1xf32>
    %259 = vector.broadcast %258 : vector<16x1xf32> to vector<16x32xf32>
    %260 = arith.mulf %255, %259 : vector<16x32xf32>
    %261 = arith.mulf %260, %18 : vector<16x32xf32>
    %262 = arith.addf %261, %21 : vector<16x32xf32>
    %263 = arith.truncf %262 : vector<16x32xf32> to vector<16x32xbf16>
    %cst_96 = arith.constant dense<0.000000e+00> : vector<16x64xf32>
    %264 = tpu.matmul %263, %2, %cst_96 {dimension_numbers = #tpu.dot_dimension_numbers<[1], [0], [0], [1], [0, 0, 1, 1], [], []>} : vector<16x32xbf16>, vector<32x64xbf16>, vector<16x64xf32> -> vector<16x64xf32>
    %265 = arith.addf %264, %12 : vector<16x64xf32>
    %cst_97 = arith.constant 0.000000e+00 : f32
    %266 = vector.broadcast %cst_97 : f32 to vector<16x64xf32>
    %267 = arith.maximumf %265, %266 : vector<16x64xf32>
    %268 = arith.truncf %267 : vector<16x64xf32> to vector<16x64xbf16>
    %cst_98 = arith.constant dense<0.000000e+00> : vector<16x32xf32>
    %269 = tpu.matmul %268, %3, %cst_98 {dimension_numbers = #tpu.dot_dimension_numbers<[1], [0], [0], [1], [0, 0, 1, 1], [], []>} : vector<16x64xbf16>, vector<64x32xbf16>, vector<16x32xf32> -> vector<16x32xf32>
    %270 = arith.addf %269, %15 : vector<16x32xf32>
    %271 = arith.addf %262, %270 : vector<16x32xf32>
    %cst_99 = arith.constant dense<0.000000e+00> : vector<16xf32>
    %272 = vector.multi_reduction <add>, %271, %cst_99 [1] : vector<16x32xf32> to vector<16xf32>
    %273 = vector.shape_cast %272 : vector<16xf32> to vector<16x1xf32>
    %cst_100 = arith.constant 3.200000e+01 : f32
    %274 = vector.broadcast %cst_100 : f32 to vector<16x1xf32>
    %275 = arith.divf %273, %274 : vector<16x1xf32>
    %276 = vector.broadcast %275 : vector<16x1xf32> to vector<16x32xf32>
    %277 = arith.subf %271, %276 : vector<16x32xf32>
    %278 = arith.mulf %277, %277 : vector<16x32xf32>
    %cst_101 = arith.constant dense<0.000000e+00> : vector<16xf32>
    %279 = vector.multi_reduction <add>, %278, %cst_101 [1] : vector<16x32xf32> to vector<16xf32>
    %280 = vector.shape_cast %279 : vector<16xf32> to vector<16x1xf32>
    %cst_102 = arith.constant 3.200000e+01 : f32
    %281 = vector.broadcast %cst_102 : f32 to vector<16x1xf32>
    %282 = arith.divf %280, %281 : vector<16x1xf32>
    %283 = vector.broadcast %275 : vector<16x1xf32> to vector<16x32xf32>
    %284 = arith.subf %271, %283 : vector<16x32xf32>
    %cst_103 = arith.constant 9.99999974E-6 : f32
    %285 = vector.broadcast %cst_103 : f32 to vector<16x1xf32>
    %286 = arith.addf %282, %285 : vector<16x1xf32>
    %287 = math.rsqrt %286 : vector<16x1xf32>
    %288 = vector.broadcast %287 : vector<16x1xf32> to vector<16x32xf32>
    %289 = arith.mulf %284, %288 : vector<16x32xf32>
    %290 = arith.mulf %289, %24 : vector<16x32xf32>
    %291 = arith.addf %290, %27 : vector<16x32xf32>
    %cst_104 = arith.constant 2.500000e-01 : f32
    %292 = vector.broadcast %cst_104 : f32 to vector<2x8x8xf32>
    %293 = arith.mulf %233, %292 : vector<2x8x8xf32>
    %c0_105 = arith.constant 0 : index
    %c0_106 = arith.constant 0 : index
    %294 = vector.load %arg14[%c0_105, %c0_106] : memref<16x32xf32, #tpu.memory_space<vmem>>, vector<16x32xf32>
    tpu.vector_store %arg14[%c0_105, %c0_106], %291 {strides = array<i32>} : memref<16x32xf32, #tpu.memory_space<vmem>>, vector<16x32xf32>,
    %c0_107 = arith.constant 0 : index
    %c0_108 = arith.constant 0 : index
    %c0_109 = arith.constant 0 : index
    %295 = vector.load %arg15[%c0_107, %c0_108, %c0_109] : memref<2x8x8xf32, #tpu.memory_space<vmem>>, vector<2x8x8xf32>
    tpu.vector_store %arg15[%c0_107, %c0_108, %c0_109], %293 {strides = array<i32>} : memref<2x8x8xf32, #tpu.memory_space<vmem>>, vector<2x8x8xf32>,
    return
  }
  func.func @transform_0(%arg0: i32) -> (i32, i32) {
    %c0_i32 = arith.constant 0 : i32
    %c0_i32_0 = arith.constant 0 : i32
    return %arg0, %c0_i32 : i32, i32
  }
  func.func @transform_1(%arg0: i32) -> (i32, i32) {
    %c0_i32 = arith.constant 0 : i32
    %c0_i32_0 = arith.constant 0 : i32
    %c0_i32_1 = arith.constant 0 : i32
    return %c0_i32, %c0_i32_0 : i32, i32
  }
  func.func @transform_2(%arg0: i32) -> (i32, i32) {
    %c0_i32 = arith.constant 0 : i32
    %c0_i32_0 = arith.constant 0 : i32
    %c0_i32_1 = arith.constant 0 : i32
    return %c0_i32, %c0_i32_0 : i32, i32
  }
  func.func @transform_3(%arg0: i32) -> (i32, i32) {
    %c0_i32 = arith.constant 0 : i32
    %c0_i32_0 = arith.constant 0 : i32
    %c0_i32_1 = arith.constant 0 : i32
    return %c0_i32, %c0_i32_0 : i32, i32
  }
  func.func @transform_4(%arg0: i32) -> (i32, i32) {
    %c0_i32 = arith.constant 0 : i32
    %c0_i32_0 = arith.constant 0 : i32
    %c0_i32_1 = arith.constant 0 : i32
    return %c0_i32, %c0_i32_0 : i32, i32
  }
  func.func @transform_5(%arg0: i32) -> (i32, i32) {
    %c0_i32 = arith.constant 0 : i32
    %c0_i32_0 = arith.constant 0 : i32
    %c0_i32_1 = arith.constant 0 : i32
    return %c0_i32, %c0_i32_0 : i32, i32
  }
  func.func @transform_6(%arg0: i32) -> (i32, i32) {
    %c0_i32 = arith.constant 0 : i32
    %c0_i32_0 = arith.constant 0 : i32
    %c0_i32_1 = arith.constant 0 : i32
    return %c0_i32, %c0_i32_0 : i32, i32
  }
  func.func @transform_7(%arg0: i32) -> (i32, i32) {
    %c0_i32 = arith.constant 0 : i32
    %c0_i32_0 = arith.constant 0 : i32
    %c0_i32_1 = arith.constant 0 : i32
    return %c0_i32, %c0_i32_0 : i32, i32
  }
  func.func @transform_8(%arg0: i32) -> (i32, i32) {
    %c0_i32 = arith.constant 0 : i32
    %c0_i32_0 = arith.constant 0 : i32
    %c0_i32_1 = arith.constant 0 : i32
    return %c0_i32, %c0_i32_0 : i32, i32
  }
  func.func @transform_9(%arg0: i32) -> (i32, i32) {
    %c0_i32 = arith.constant 0 : i32
    %c0_i32_0 = arith.constant 0 : i32
    %c0_i32_1 = arith.constant 0 : i32
    return %c0_i32, %c0_i32_0 : i32, i32
  }
  func.func @transform_10(%arg0: i32) -> (i32, i32) {
    %c0_i32 = arith.constant 0 : i32
    %c0_i32_0 = arith.constant 0 : i32
    %c0_i32_1 = arith.constant 0 : i32
    return %c0_i32, %c0_i32_0 : i32, i32
  }
  func.func @transform_11(%arg0: i32) -> (i32, i32) {
    %c0_i32 = arith.constant 0 : i32
    %c0_i32_0 = arith.constant 0 : i32
    %c0_i32_1 = arith.constant 0 : i32
    return %c0_i32, %c0_i32_0 : i32, i32
  }
  func.func @transform_12(%arg0: i32) -> (i32, i32) {
    %c0_i32 = arith.constant 0 : i32
    %c0_i32_0 = arith.constant 0 : i32
    %c0_i32_1 = arith.constant 0 : i32
    return %c0_i32, %c0_i32_0 : i32, i32
  }
  func.func @transform_13(%arg0: i32) -> (i32, i32) {
    %c0_i32 = arith.constant 0 : i32
    %c0_i32_0 = arith.constant 0 : i32
    return %arg0, %c0_i32 : i32, i32
  }
  func.func @transform_14(%arg0: i32) -> (i32, i32, i32) {
    %c0_i32 = arith.constant 0 : i32
    %c0_i32_0 = arith.constant 0 : i32
    %c0_i32_1 = arith.constant 0 : i32
    return %arg0, %c0_i32, %c0_i32_0 : i32, i32, i32
  }
}

</mosaic_0001>

<llo_original>
// kernel: tpu_custom_call.1
$region0: #{tpu_custom_call.1}
  #allocation0 [shape = 'u32[]', space=smem, size = 0x4, offset = 0x4, fixed_abs, tag = 'smem constant byte address 0x4 - core index']
  #allocation1 [shape = 'u32[72,128]{1,0:T(1,128)}', space=vmem, size = 0x9000, scoped, tag = 'internal scratch']
  #allocation2 [shape = 'f32[16,32]{1,0:T(8,128)}', space=vmem, size = 0x2000, scoped, tag = 'scratch operand']
  %s0 = inlined_call_operand.vmem [shape: f32[16,32], index: 0, kind: input, shape index: {}]
  %s1 = inlined_call_operand.vmem [shape: bf16[32,96], index: 1, kind: input, shape index: {}]
  %s2 = inlined_call_operand.vmem [shape: f32[1,96], index: 2, kind: input, shape index: {}]
  %s3 = inlined_call_operand.vmem [shape: bf16[32,32], index: 3, kind: input, shape index: {}]
  %s4 = inlined_call_operand.vmem [shape: f32[1,32], index: 4, kind: input, shape index: {}]
  %s5 = inlined_call_operand.vmem [shape: f32[1,32], index: 5, kind: input, shape index: {}]
  %s6 = inlined_call_operand.vmem [shape: f32[1,32], index: 6, kind: input, shape index: {}]
  %s7 = inlined_call_operand.hbm [shape: bf16[32,64], index: 7, kind: input, shape index: {}]
  %s8 = inlined_call_operand.vmem [shape: f32[1,64], index: 8, kind: input, shape index: {}]
  %s9 = inlined_call_operand.vmem [shape: bf16[64,32], index: 9, kind: input, shape index: {}]
  %s10 = inlined_call_operand.vmem [shape: f32[1,32], index: 10, kind: input, shape index: {}]
  %s11 = inlined_call_operand.vmem [shape: f32[1,32], index: 11, kind: input, shape index: {}]
  %s12 = inlined_call_operand.vmem [shape: f32[1,32], index: 12, kind: input, shape index: {}]
  %s13 = inlined_call_operand.hbm [shape: f32[16,32], index: 13, kind: output, shape index: {0}]
  %s14 = inlined_call_operand.hbm [shape: f32[2,8,8], index: 14, kind: output, shape index: {1}]
  %15 = xla_tuple %s13, %s14
  %s16 = sld [smem:[#allocation0]]
  $region74: #{tpu_custom_call.1} parent=0
    _
  %s18 = ssub.s32 1, %s16
  %s19 = scalar_select 0, %s18, %s16
  $region1: #{tpu_custom_call.1} parent=0
    #allocation3 [shape = 'u8[8192]{0}', space=vmem, size = 0x2000, scoped, tag = 'input window, operand 7, single buffered']
    #allocation4 [shape = 's32[1]{0}', space=sflag, size = 0x4, scoped, tag = 'scoped memory for tpu_custom_call.1']
    #allocation5 [shape = 's32[1]{0}', space=sflag, size = 0x4, scoped, tag = 'scoped memory for tpu_custom_call.1']
    #allocation6 [shape = 'u8[8192]{0}', space=vmem, size = 0x2000, scoped, tag = 'output window, operand 0, single buffered']
    #allocation7 [shape = 'u8[8192]{0}', space=vmem, size = 0x2000, scoped, tag = 'output window, operand 1, single buffered']
    #allocation8 [shape = 's32[1]{0}', space=sflag, size = 0x4, scoped, tag = 'scoped memory for tpu_custom_call.1']
    %20 = vsyncpa [#allocation4], 0
    %21 = vsyncpa [#allocation5], 0
    %22 = vsyncpa [#allocation8], 0
    // Predicated region
    $region2: #{tpu_custom_call.1} parent=1 // pred_check
      _
    $region3: #{tpu_custom_call.1} parent=1 // pred_check_branch
      %24 = sbr.rel (0) target = $region5
    $region4: #{tpu_custom_call.1} parent=1 // pred_region
      _
    $region5: #{tpu_custom_call.1} parent=1 // pred_fallthru
      _
    // Predicated region
    $region6: #{tpu_custom_call.1} parent=1 // pred_check
      _
    $region7: #{tpu_custom_call.1} parent=1 // pred_check_branch
      %26 = sbr.rel (0) target = $region9
    $region8: #{tpu_custom_call.1} parent=1 // pred_region
      _
    $region9: #{tpu_custom_call.1} parent=1 // pred_fallthru
      _
    // Predicated region
    $region10: #{tpu_custom_call.1} parent=1 // pred_check
      _
    $region11: #{tpu_custom_call.1} parent=1 // pred_check_branch
      %28 = sbr.rel (0) target = $region13
    $region12: #{tpu_custom_call.1} parent=1 // pred_region
      _
    $region13: #{tpu_custom_call.1} parent=1 // pred_fallthru
      _
    // Predicated region
    $region14: #{tpu_custom_call.1} parent=1 // pred_check
      _
    $region15: #{tpu_custom_call.1} parent=1 // pred_check_branch
      %30 = sbr.rel (0) target = $region17
    $region16: #{tpu_custom_call.1} parent=1 // pred_region
      _
    $region17: #{tpu_custom_call.1} parent=1 // pred_fallthru
      _
    // Predicated region
    $region18: #{tpu_custom_call.1} parent=1 // pred_check
      _
    $region19: #{tpu_custom_call.1} parent=1 // pred_check_branch
      %32 = sbr.rel (0) target = $region21
    $region20: #{tpu_custom_call.1} parent=1 // pred_region
      _
    $region21: #{tpu_custom_call.1} parent=1 // pred_fallthru
      _
    // Predicated region
    $region22: #{tpu_custom_call.1} parent=1 // pred_check
      _
    $region23: #{tpu_custom_call.1} parent=1 // pred_check_branch
      %34 = sbr.rel (0) target = $region25
    $region24: #{tpu_custom_call.1} parent=1 // pred_region
      _
    $region25: #{tpu_custom_call.1} parent=1 // pred_fallthru
      _
    // Predicated region
    $region26: #{tpu_custom_call.1} parent=1 // pred_check
      _
    $region27: #{tpu_custom_call.1} parent=1 // pred_check_branch
      %36 = sbr.rel (0) target = $region29
    $region28: #{tpu_custom_call.1} parent=1 // pred_region
      _
    $region29: #{tpu_custom_call.1} parent=1 // pred_fallthru
      _
    // Predicated region
    $region30: #{tpu_custom_call.1} parent=1 // pred_check
      _
    $region31: #{tpu_custom_call.1} parent=1 // pred_check_branch
      %38 = sbr.rel (0) target = $region33
    $region32: #{tpu_custom_call.1} parent=1 // pred_region
      %40 = vsyncadd [#allocation4], 0
      %s41 = sshll.u32 %s7, 4
      %s42 = int_to_ptr.hbm [resolvable:$true] %s41
      %s43 = sshll.u32 [#allocation3], 4
      %s44 = int_to_ptr.vmem [resolvable:$true] %s43
      %49 = dma.hbm_to_vmem [thread:$0]  %s42, 256, %s44, [#allocation4], 64, 64, 4
    $region33: #{tpu_custom_call.1} parent=1 // pred_fallthru
      _
    // Predicated region
    $region34: #{tpu_custom_call.1} parent=1 // pred_check
      _
    $region35: #{tpu_custom_call.1} parent=1 // pred_check_branch
      %51 = sbr.rel (0) target = $region37
    $region36: #{tpu_custom_call.1} parent=1 // pred_region
      _
    $region37: #{tpu_custom_call.1} parent=1 // pred_fallthru
      _
    // Predicated region
    $region38: #{tpu_custom_call.1} parent=1 // pred_check
      _
    $region39: #{tpu_custom_call.1} parent=1 // pred_check_branch
      %53 = sbr.rel (0) target = $region41
    $region40: #{tpu_custom_call.1} parent=1 // pred_region
      _
    $region41: #{tpu_custom_call.1} parent=1 // pred_fallthru
      _
    // Predicated region
    $region42: #{tpu_custom_call.1} parent=1 // pred_check
      _
    $region43: #{tpu_custom_call.1} parent=1 // pred_check_branch
      %55 = sbr.rel (0) target = $region45
    $region44: #{tpu_custom_call.1} parent=1 // pred_region
      _
    $region45: #{tpu_custom_call.1} parent=1 // pred_fallthru
      _
    // Predicated region
    $region46: #{tpu_custom_call.1} parent=1 // pred_check
      _
    $region47: #{tpu_custom_call.1} parent=1 // pred_check_branch
      %57 = sbr.rel (0) target = $region49
    $region48: #{tpu_custom_call.1} parent=1 // pred_region
      _
    $region49: #{tpu_custom_call.1} parent=1 // pred_fallthru
      _
    // Predicated region
    $region50: #{tpu_custom_call.1} parent=1 // pred_check
      _
    $region51: #{tpu_custom_call.1} parent=1 // pred_check_branch
      %59 = sbr.rel (0) target = $region53
    $region52: #{tpu_custom_call.1} parent=1 // pred_region
      _
    $region53: #{tpu_custom_call.1} parent=1 // pred_fallthru
      _
    // Predicated region
    $region54: #{tpu_custom_call.1} parent=1 // pred_check
      _
    $region55: #{tpu_custom_call.1} parent=1 // pred_check_branch
      %61 = sbr.rel (0) target = $region57
    $region56: #{tpu_custom_call.1} parent=1 // pred_region
      %63 = dma.done [#allocation4], 256
    $region57: #{tpu_custom_call.1} parent=1 // pred_fallthru
      _
    %v65 = vld [vmem:[%s1] sm:$0xf]
    %v66 = vld [vmem:[%s1 + $0x4] sm:$0xf]
    %v67 = vld [vmem:[%s1 + $0x8] sm:$0xf]
    %v68 = vld [vmem:[%s1 + $0xc] sm:$0xf]
    %v69 = vld [vmem:[%s3] sm:$0xf]
    %v70 = vld [vmem:[%s3 + $0x4] sm:$0xf]
    %v71 = vld [vmem:[%s3 + $0x8] sm:$0xf]
    %v72 = vld [vmem:[%s3 + $0xc] sm:$0xf]
    %v73 = vld [vmem:[#allocation3] sm:$0xf]
    %v74 = vld [vmem:[#allocation3 + $0x4] sm:$0xf]
    %v75 = vld [vmem:[#allocation3 + $0x8] sm:$0xf]
    %v76 = vld [vmem:[#allocation3 + $0xc] sm:$0xf]
    %v77 = vld [vmem:[%s9] sm:$0xf]
    %v78 = vld [vmem:[%s9 + $0x4] sm:$0xf]
    %v79 = vld [vmem:[%s9 + $0x8] sm:$0xf]
    %v80 = vld [vmem:[%s9 + $0xc] sm:$0xf]
    %v81 = vld [vmem:[%s9 + $0x10] sm:$0xf]
    %v82 = vld [vmem:[%s9 + $0x14] sm:$0xf]
    %v83 = vld [vmem:[%s9 + $0x18] sm:$0xf]
    %v84 = vld [vmem:[%s9 + $0x1c] sm:$0xf]
    %v85 = vld [vmem:[%s2] sm:$0x1]
    %v87 = vperm.slane %v85, 0
    %v89 = vld [vmem:[%s4] sm:$0x1]
    %v91 = vperm.slane %v89, 0
    %v93 = vld [vmem:[%s8] sm:$0x1]
    %v95 = vperm.slane %v93, 0
    %v97 = vld [vmem:[%s10] sm:$0x1]
    %v99 = vperm.slane %v97, 0
    %v101 = vld [vmem:[%s5] sm:$0x1]
    %v103 = vperm.slane %v101, 0
    %v105 = vld [vmem:[%s6] sm:$0x1]
    %v107 = vperm.slane %v105, 0
    %v109 = vld [vmem:[%s11] sm:$0x1]
    %v111 = vperm.slane %v109, 0
    %v113 = vld [vmem:[%s12] sm:$0x1]
    %v115 = vperm.slane %v113, 0
    %v117 = vld [vmem:[%s0] sm:$0xff]
    %v118 = vld [vmem:[%s0 + $0x8] sm:$0xff]
    %v119 = vpack.c.bf16 %v118, %v117
    %v124 = vunpack.c.l.b16 %v65
    %v125 = vunpack.c.l.b16 %v66
    %v126 = vunpack.c.l.b16 %v67
    %v127 = vunpack.c.l.b16 %v68
    %v128 = vpack.c.b16 %v125, %v124
    %v129 = vpack.c.b16 %v127, %v126
    %vm132 = vcmask 261120
    %v134 = vsel %vm132, %v119, 0
    %136 = vmatpush.bf16.msra.mxu0 0
    %137 = vmatpush.bf16.msra.mxu0 0
    %138 = vmatpush.bf16.msra.mxu0 0
    %139 = vmatpush.bf16.msra.mxu0 0
    %140 = vmatpush.bf16.msra.mxu0 0
    %141 = vmatpush.bf16.msra.mxu0 0
    %142 = vmatpush.bf16.msra.mxu0 %v129
    %143 = vmatpush.bf16.msra.mxu0 %v128
    %144 = vmatmul.bf16.gmra.mxu0 %v134
    %v145 = vpop.f32.mrf.mxu0
    %v146 = vadd.f32 %v87, %v145
    %v147 = vpop.f32.mrf.mxu0
    %v148 = vadd.f32 %v87, %v147
    %149 = vdwg.mxu0
    %v150 = vpack.c.bf16 %v146, %v146
    %v151 = vpack.c.bf16 %v148, %v148
    %v153 = vunpack.c.l.b16 %v150
    %v154 = vpack.c.b16 %v153, %v153
    %155 = vrot.lane.b32.xlu0 %v154, 96
    %v156 = vpop.permute.xlu0 %155
    %vm157 = vcmask 64512
    %v159 = vsel %vm157, %v150, 0
    %v162 = vsel %vm157, %v156, 0
    %164 = vmatpush.bf16.xpose.msra.mxu0 0
    %165 = vmatpush.bf16.xpose.msra.mxu0 0
    %166 = vmatpush.bf16.xpose.msra.mxu0 0
    %167 = vmatpush.bf16.xpose.msra.mxu0 0
    %168 = vmatpush.bf16.xpose.msra.mxu0 0
    %169 = vmatpush.bf16.xpose.msra.mxu0 0
    %170 = vmatpush.bf16.xpose.msra.mxu0 0
    %171 = vmatpush.bf16.xpose.msra.mxu0 %v162
    %172 = vmatmul.bf16.gmra.mxu0 %v159
    %v173 = vpop.f32.mrf.mxu0
    %v174 = vadd.f32 0.0, %v173
    %v175 = vpop.f32.mrf.mxu0
    %176 = vdwg.mxu0
    %v178 = vunpack.c.l.b16 %v151
    %v179 = vpack.c.b16 %v178, %v178
    %180 = vrot.lane.b32.xlu0 %v179, 96
    %v181 = vpop.permute.xlu0 %180
    %v183 = vsel %vm157, %v151, 0
    %v186 = vsel %vm157, %v181, 0
    %188 = vmatpush.bf16.xpose.msra.mxu0 0
    %189 = vmatpush.bf16.xpose.msra.mxu0 0
    %190 = vmatpush.bf16.xpose.msra.mxu0 0
    %191 = vmatpush.bf16.xpose.msra.mxu0 0
    %192 = vmatpush.bf16.xpose.msra.mxu0 0
    %193 = vmatpush.bf16.xpose.msra.mxu0 0
    %194 = vmatpush.bf16.xpose.msra.mxu0 0
    %195 = vmatpush.bf16.xpose.msra.mxu0 %v186
    %196 = vmatmul.bf16.gmra.mxu0 %v183
    %v197 = vpop.f32.mrf.mxu0
    %v198 = vadd.f32 0.0, %v197
    %v199 = vpop.f32.mrf.mxu0
    %200 = vdwg.mxu0
    %v201 = vsel %vm157, %v174, -inf
    %202 = vmax.xlane.f32.xlu0 %v201
    %v203 = vpop.xlane.xlu0 %202
    %v204 = vsel %vm157, %v198, -inf
    %205 = vmax.xlane.f32.xlu0 %v204
    %v206 = vpop.xlane.xlu0 %205
    %v207 = vsub.f32 %v174, %v203
    %v208 = vsub.f32 %v198, %v206
    %v209 = vmul.f32 %v207, 1.442695
    %v210 = vpow.pop %v209
    %v211 = vmul.f32 %v208, 1.442695
    %v212 = vpow.pop %v211
    %v213 = vsel %vm157, %v210, 0.0
    %214 = vadd.xlane.f32.xlu0 %v213
    %v215 = vpop.xlane.xlu0 %214
    %v216 = vsel %vm157, %v212, 0.0
    %217 = vadd.xlane.f32.xlu0 %v216
    %v218 = vpop.xlane.xlu0 %217
    %v219 = vrcp.pop %v215
    %v220 = vrcp.pop %v218
    %v221 = vmul.f32 %v210, %v219
    %v222 = vmul.f32 %v212, %v220
    %v223 = vpack.c.bf16 %v221, %v221
    %v224 = vpack.c.bf16 %v222, %v222
    %225 = vrot.lane.b32.xlu0 %v154, 64
    %v226 = vpop.permute.xlu0 %225
    %v228 = vsel %vm157, %v223, 0
    %vm230 = vcmask 1043456
    %v232 = vsel %vm230, %v226, 0
    %234 = vmatpush.bf16.msra.mxu0 0
    %235 = vmatpush.bf16.msra.mxu0 0
    %236 = vmatpush.bf16.msra.mxu0 0
    %237 = vmatpush.bf16.msra.mxu0 0
    %238 = vmatpush.bf16.msra.mxu0 0
    %239 = vmatpush.bf16.msra.mxu0 0
    %240 = vmatpush.bf16.msra.mxu0 0
    %241 = vmatpush.bf16.msra.mxu0 %v232
    %242 = vmatmul.bf16.gmra.mxu0 %v228
    %v243 = vpop.f32.mrf.mxu0
    %v244 = vadd.f32 0.0, %v243
    %v245 = vpop.f32.mrf.mxu0
    %246 = vdwg.mxu0
    %247 = vrot.lane.b32.xlu0 %v179, 64
    %v248 = vpop.permute.xlu0 %247
    %v250 = vsel %vm157, %v224, 0
    %v253 = vsel %vm230, %v248, 0
    %255 = vmatpush.bf16.msra.mxu0 0
    %256 = vmatpush.bf16.msra.mxu0 0
    %257 = vmatpush.bf16.msra.mxu0 0
    %258 = vmatpush.bf16.msra.mxu0 0
    %259 = vmatpush.bf16.msra.mxu0 0
    %260 = vmatpush.bf16.msra.mxu0 0
    %261 = vmatpush.bf16.msra.mxu0 0
    %262 = vmatpush.bf16.msra.mxu0 %v253
    %263 = vmatmul.bf16.gmra.mxu0 %v250
    %v264 = vpop.f32.mrf.mxu0
    %v265 = vadd.f32 0.0, %v264
    %v266 = vpop.f32.mrf.mxu0
    %267 = vdwg.mxu0
    %268 = vst.msk [vmem:[#allocation2] sm:$0xff] %vm157, %v244
    %269 = vst.msk [vmem:[#allocation2 + $0x8] sm:$0xff] %vm157, %v265
    %270 = vrot.lane.b32.xlu0 %v154, 120
    %v271 = vpop.permute.xlu0 %270
    %272 = vrot.lane.b32.xlu0 %v154, 88
    %v273 = vpop.permute.xlu0 %272
    %v275 = vsel %vm157, %v271, 0
    %v278 = vsel %vm157, %v273, 0
    %280 = vmatpush.bf16.xpose.msra.mxu0 0
    %281 = vmatpush.bf16.xpose.msra.mxu0 0
    %282 = vmatpush.bf16.xpose.msra.mxu0 0
    %283 = vmatpush.bf16.xpose.msra.mxu0 0
    %284 = vmatpush.bf16.xpose.msra.mxu0 0
    %285 = vmatpush.bf16.xpose.msra.mxu0 0
    %286 = vmatpush.bf16.xpose.msra.mxu0 0
    %287 = vmatpush.bf16.xpose.msra.mxu0 %v278
    %288 = vmatmul.bf16.gmra.mxu0 %v275
    %v289 = vpop.f32.mrf.mxu0
    %v290 = vadd.f32 0.0, %v289
    %v291 = vpop.f32.mrf.mxu0
    %292 = vdwg.mxu0
    %293 = vrot.lane.b32.xlu0 %v179, 120
    %v294 = vpop.permute.xlu0 %293
    %295 = vrot.lane.b32.xlu0 %v179, 88
    %v296 = vpop.permute.xlu0 %295
    %v298 = vsel %vm157, %v294, 0
    %v301 = vsel %vm157, %v296, 0
    %303 = vmatpush.bf16.xpose.msra.mxu0 0
    %304 = vmatpush.bf16.xpose.msra.mxu0 0
    %305 = vmatpush.bf16.xpose.msra.mxu0 0
    %306 = vmatpush.bf16.xpose.msra.mxu0 0
    %307 = vmatpush.bf16.xpose.msra.mxu0 0
    %308 = vmatpush.bf16.xpose.msra.mxu0 0
    %309 = vmatpush.bf16.xpose.msra.mxu0 0
    %310 = vmatpush.bf16.xpose.msra.mxu0 %v301
    %311 = vmatmul.bf16.gmra.mxu0 %v298
    %v312 = vpop.f32.mrf.mxu0
    %v313 = vadd.f32 0.0, %v312
    %v314 = vpop.f32.mrf.mxu0
    %315 = vdwg.mxu0
    %v316 = vsel %vm157, %v290, -inf
    %317 = vmax.xlane.f32.xlu0 %v316
    %v318 = vpop.xlane.xlu0 %317
    %v319 = vsel %vm157, %v313, -inf
    %320 = vmax.xlane.f32.xlu0 %v319
    %v321 = vpop.xlane.xlu0 %320
    %v322 = vsub.f32 %v290, %v318
    %v323 = vsub.f32 %v313, %v321
    %v324 = vmul.f32 %v322, 1.442695
    %v325 = vpow.pop %v324
    %v326 = vmul.f32 %v323, 1.442695
    %v327 = vpow.pop %v326
    %v328 = vsel %vm157, %v325, 0.0
    %329 = vadd.xlane.f32.xlu0 %v328
    %v330 = vpop.xlane.xlu0 %329
    %v331 = vsel %vm157, %v327, 0.0
    %332 = vadd.xlane.f32.xlu0 %v331
    %v333 = vpop.xlane.xlu0 %332
    %v334 = vrcp.pop %v330
    %v335 = vrcp.pop %v333
    %v336 = vmul.f32 %v325, %v334
    %v337 = vmul.f32 %v327, %v335
    %v338 = vpack.c.bf16 %v336, %v336
    %v339 = vpack.c.bf16 %v337, %v337
    %340 = vrot.lane.b32.xlu0 %v154, 56
    %v341 = vpop.permute.xlu0 %340
    %v343 = vsel %vm157, %v338, 0
    %v346 = vsel %vm230, %v341, 0
    %348 = vmatpush.bf16.msra.mxu0 0
    %349 = vmatpush.bf16.msra.mxu0 0
    %350 = vmatpush.bf16.msra.mxu0 0
    %351 = vmatpush.bf16.msra.mxu0 0
    %352 = vmatpush.bf16.msra.mxu0 0
    %353 = vmatpush.bf16.msra.mxu0 0
    %354 = vmatpush.bf16.msra.mxu0 0
    %355 = vmatpush.bf16.msra.mxu0 %v346
    %356 = vmatmul.bf16.gmra.mxu0 %v343
    %v357 = vpop.f32.mrf.mxu0
    %v358 = vadd.f32 0.0, %v357
    %v359 = vpop.f32.mrf.mxu0
    %360 = vdwg.mxu0
    %361 = vrot.lane.b32.xlu0 %v179, 56
    %v362 = vpop.permute.xlu0 %361
    %v364 = vsel %vm157, %v339, 0
    %v367 = vsel %vm230, %v362, 0
    %369 = vmatpush.bf16.msra.mxu0 0
    %370 = vmatpush.bf16.msra.mxu0 0
    %371 = vmatpush.bf16.msra.mxu0 0
    %372 = vmatpush.bf16.msra.mxu0 0
    %373 = vmatpush.bf16.msra.mxu0 0
    %374 = vmatpush.bf16.msra.mxu0 0
    %375 = vmatpush.bf16.msra.mxu0 0
    %376 = vmatpush.bf16.msra.mxu0 %v367
    %377 = vmatmul.bf16.gmra.mxu0 %v364
    %v378 = vpop.f32.mrf.mxu0
    %v379 = vadd.f32 0.0, %v378
    %v380 = vpop.f32.mrf.mxu0
    %381 = vdwg.mxu0
    %384 = vrot.lane.b32.xlu0 %v358, 8
    %v385 = vpop.permute.xlu0 %384
    %386 = vrot.lane.b32.xlu0 %v379, 8
    %v387 = vpop.permute.xlu0 %386
    %vm390 = vcmask 130112
    %391 = vst.msk [vmem:[#allocation2] sm:$0xff] %vm390, %v385
    %392 = vst.msk [vmem:[#allocation2 + $0x8] sm:$0xff] %vm390, %v387
    %393 = vrot.lane.b32.xlu0 %v154, 112
    %v394 = vpop.permute.xlu0 %393
    %395 = vrot.lane.b32.xlu0 %v154, 80
    %v396 = vpop.permute.xlu0 %395
    %v398 = vsel %vm157, %v394, 0
    %v401 = vsel %vm157, %v396, 0
    %403 = vmatpush.bf16.xpose.msra.mxu0 0
    %404 = vmatpush.bf16.xpose.msra.mxu0 0
    %405 = vmatpush.bf16.xpose.msra.mxu0 0
    %406 = vmatpush.bf16.xpose.msra.mxu0 0
    %407 = vmatpush.bf16.xpose.msra.mxu0 0
    %408 = vmatpush.bf16.xpose.msra.mxu0 0
    %409 = vmatpush.bf16.xpose.msra.mxu0 0
    %410 = vmatpush.bf16.xpose.msra.mxu0 %v401
    %411 = vmatmul.bf16.gmra.mxu0 %v398
    %v412 = vpop.f32.mrf.mxu0
    %v413 = vadd.f32 0.0, %v412
    %v414 = vpop.f32.mrf.mxu0
    %415 = vdwg.mxu0
    %416 = vrot.lane.b32.xlu0 %v179, 112
    %v417 = vpop.permute.xlu0 %416
    %418 = vrot.lane.b32.xlu0 %v179, 80
    %v419 = vpop.permute.xlu0 %418
    %v421 = vsel %vm157, %v417, 0
    %v424 = vsel %vm157, %v419, 0
    %426 = vmatpush.bf16.xpose.msra.mxu0 0
    %427 = vmatpush.bf16.xpose.msra.mxu0 0
    %428 = vmatpush.bf16.xpose.msra.mxu0 0
    %429 = vmatpush.bf16.xpose.msra.mxu0 0
    %430 = vmatpush.bf16.xpose.msra.mxu0 0
    %431 = vmatpush.bf16.xpose.msra.mxu0 0
    %432 = vmatpush.bf16.xpose.msra.mxu0 0
    %433 = vmatpush.bf16.xpose.msra.mxu0 %v424
    %434 = vmatmul.bf16.gmra.mxu0 %v421
    %v435 = vpop.f32.mrf.mxu0
    %v436 = vadd.f32 0.0, %v435
    %v437 = vpop.f32.mrf.mxu0
    %438 = vdwg.mxu0
    %v439 = vsel %vm157, %v413, -inf
    %440 = vmax.xlane.f32.xlu0 %v439
    %v441 = vpop.xlane.xlu0 %440
    %v442 = vsel %vm157, %v436, -inf
    %443 = vmax.xlane.f32.xlu0 %v442
    %v444 = vpop.xlane.xlu0 %443
    %v445 = vsub.f32 %v413, %v441
    %v446 = vsub.f32 %v436, %v444
    %v447 = vmul.f32 %v445, 1.442695
    %v448 = vpow.pop %v447
    %v449 = vmul.f32 %v446, 1.442695
    %v450 = vpow.pop %v449
    %v451 = vsel %vm157, %v448, 0.0
    %452 = vadd.xlane.f32.xlu0 %v451
    %v453 = vpop.xlane.xlu0 %452
    %v454 = vsel %vm157, %v450, 0.0
    %455 = vadd.xlane.f32.xlu0 %v454
    %v456 = vpop.xlane.xlu0 %455
    %v457 = vrcp.pop %v453
    %v458 = vrcp.pop %v456
    %v459 = vmul.f32 %v448, %v457
    %v460 = vmul.f32 %v450, %v458
    %v461 = vpack.c.bf16 %v459, %v459
    %v462 = vpack.c.bf16 %v460, %v460
    %463 = vrot.lane.b32.xlu0 %v154, 48
    %v464 = vpop.permute.xlu0 %463
    %v466 = vsel %vm157, %v461, 0
    %v469 = vsel %vm230, %v464, 0
    %471 = vmatpush.bf16.msra.mxu0 0
    %472 = vmatpush.bf16.msra.mxu0 0
    %473 = vmatpush.bf16.msra.mxu0 0
    %474 = vmatpush.bf16.msra.mxu0 0
    %475 = vmatpush.bf16.msra.mxu0 0
    %476 = vmatpush.bf16.msra.mxu0 0
    %477 = vmatpush.bf16.msra.mxu0 0
    %478 = vmatpush.bf16.msra.mxu0 %v469
    %479 = vmatmul.bf16.gmra.mxu0 %v466
    %v480 = vpop.f32.mrf.mxu0
    %v481 = vadd.f32 0.0, %v480
    %v482 = vpop.f32.mrf.mxu0
    %483 = vdwg.mxu0
    %484 = vrot.lane.b32.xlu0 %v179, 48
    %v485 = vpop.permute.xlu0 %484
    %v487 = vsel %vm157, %v462, 0
    %v490 = vsel %vm230, %v485, 0
    %492 = vmatpush.bf16.msra.mxu0 0
    %493 = vmatpush.bf16.msra.mxu0 0
    %494 = vmatpush.bf16.msra.mxu0 0
    %495 = vmatpush.bf16.msra.mxu0 0
    %496 = vmatpush.bf16.msra.mxu0 0
    %497 = vmatpush.bf16.msra.mxu0 0
    %498 = vmatpush.bf16.msra.mxu0 0
    %499 = vmatpush.bf16.msra.mxu0 %v490
    %500 = vmatmul.bf16.gmra.mxu0 %v487
    %v501 = vpop.f32.mrf.mxu0
    %v502 = vadd.f32 0.0, %v501
    %v503 = vpop.f32.mrf.mxu0
    %504 = vdwg.mxu0
    %507 = vrot.lane.b32.xlu0 %v481, 16
    %v508 = vpop.permute.xlu0 %507
    %509 = vrot.lane.b32.xlu0 %v502, 16
    %v510 = vpop.permute.xlu0 %509
    %vm513 = vcmask 195712
    %514 = vst.msk [vmem:[#allocation2] sm:$0xff] %vm513, %v508
    %515 = vst.msk [vmem:[#allocation2 + $0x8] sm:$0xff] %vm513, %v510
    %516 = vrot.lane.b32.xlu0 %v154, 104
    %v517 = vpop.permute.xlu0 %516
    %518 = vrot.lane.b32.xlu0 %v154, 72
    %v519 = vpop.permute.xlu0 %518
    %v521 = vsel %vm157, %v517, 0
    %v524 = vsel %vm157, %v519, 0
    %526 = vmatpush.bf16.xpose.msra.mxu0 0
    %527 = vmatpush.bf16.xpose.msra.mxu0 0
    %528 = vmatpush.bf16.xpose.msra.mxu0 0
    %529 = vmatpush.bf16.xpose.msra.mxu0 0
    %530 = vmatpush.bf16.xpose.msra.mxu0 0
    %531 = vmatpush.bf16.xpose.msra.mxu0 0
    %532 = vmatpush.bf16.xpose.msra.mxu0 0
    %533 = vmatpush.bf16.xpose.msra.mxu0 %v524
    %534 = vmatmul.bf16.gmra.mxu0 %v521
    %v535 = vpop.f32.mrf.mxu0
    %v536 = vadd.f32 0.0, %v535
    %v537 = vpop.f32.mrf.mxu0
    %538 = vdwg.mxu0
    %539 = vrot.lane.b32.xlu0 %v179, 104
    %v540 = vpop.permute.xlu0 %539
    %541 = vrot.lane.b32.xlu0 %v179, 72
    %v542 = vpop.permute.xlu0 %541
    %v544 = vsel %vm157, %v540, 0
    %v547 = vsel %vm157, %v542, 0
    %549 = vmatpush.bf16.xpose.msra.mxu0 0
    %550 = vmatpush.bf16.xpose.msra.mxu0 0
    %551 = vmatpush.bf16.xpose.msra.mxu0 0
    %552 = vmatpush.bf16.xpose.msra.mxu0 0
    %553 = vmatpush.bf16.xpose.msra.mxu0 0
    %554 = vmatpush.bf16.xpose.msra.mxu0 0
    %555 = vmatpush.bf16.xpose.msra.mxu0 0
    %556 = vmatpush.bf16.xpose.msra.mxu0 %v547
    %557 = vmatmul.bf16.gmra.mxu0 %v544
    %v558 = vpop.f32.mrf.mxu0
    %v559 = vadd.f32 0.0, %v558
    %v560 = vpop.f32.mrf.mxu0
    %561 = vdwg.mxu0
    %v562 = vsel %vm157, %v536, -inf
    %563 = vmax.xlane.f32.xlu0 %v562
    %v564 = vpop.xlane.xlu0 %563
    %v565 = vsel %vm157, %v559, -inf
    %566 = vmax.xlane.f32.xlu0 %v565
    %v567 = vpop.xlane.xlu0 %566
    %v568 = vsub.f32 %v536, %v564
    %v569 = vsub.f32 %v559, %v567
    %v570 = vmul.f32 %v568, 1.442695
    %v571 = vpow.pop %v570
    %v572 = vmul.f32 %v569, 1.442695
    %v573 = vpow.pop %v572
    %v574 = vsel %vm157, %v571, 0.0
    %575 = vadd.xlane.f32.xlu0 %v574
    %v576 = vpop.xlane.xlu0 %575
    %v577 = vsel %vm157, %v573, 0.0
    %578 = vadd.xlane.f32.xlu0 %v577
    %v579 = vpop.xlane.xlu0 %578
    %v580 = vrcp.pop %v576
    %v581 = vrcp.pop %v579
    %v582 = vmul.f32 %v571, %v580
    %v583 = vmul.f32 %v573, %v581
    %v584 = vpack.c.bf16 %v582, %v582
    %v585 = vpack.c.bf16 %v583, %v583
    %586 = vrot.lane.b32.xlu0 %v154, 40
    %v587 = vpop.permute.xlu0 %586
    %v589 = vsel %vm157, %v584, 0
    %v592 = vsel %vm230, %v587, 0
    %594 = vmatpush.bf16.msra.mxu0 0
    %595 = vmatpush.bf16.msra.mxu0 0
    %596 = vmatpush.bf16.msra.mxu0 0
    %597 = vmatpush.bf16.msra.mxu0 0
    %598 = vmatpush.bf16.msra.mxu0 0
    %599 = vmatpush.bf16.msra.mxu0 0
    %600 = vmatpush.bf16.msra.mxu0 0
    %601 = vmatpush.bf16.msra.mxu0 %v592
    %602 = vmatmul.bf16.gmra.mxu0 %v589
    %v603 = vpop.f32.mrf.mxu0
    %v604 = vadd.f32 0.0, %v603
    %v605 = vpop.f32.mrf.mxu0
    %606 = vdwg.mxu0
    %607 = vrot.lane.b32.xlu0 %v179, 40
    %v608 = vpop.permute.xlu0 %607
    %v610 = vsel %vm157, %v585, 0
    %v613 = vsel %vm230, %v608, 0
    %615 = vmatpush.bf16.msra.mxu0 0
    %616 = vmatpush.bf16.msra.mxu0 0
    %617 = vmatpush.bf16.msra.mxu0 0
    %618 = vmatpush.bf16.msra.mxu0 0
    %619 = vmatpush.bf16.msra.mxu0 0
    %620 = vmatpush.bf16.msra.mxu0 0
    %621 = vmatpush.bf16.msra.mxu0 0
    %622 = vmatpush.bf16.msra.mxu0 %v613
    %623 = vmatmul.bf16.gmra.mxu0 %v610
    %v624 = vpop.f32.mrf.mxu0
    %v625 = vadd.f32 0.0, %v624
    %v626 = vpop.f32.mrf.mxu0
    %627 = vdwg.mxu0
    %630 = vrot.lane.b32.xlu0 %v604, 24
    %v631 = vpop.permute.xlu0 %630
    %632 = vrot.lane.b32.xlu0 %v625, 24
    %v633 = vpop.permute.xlu0 %632
    %vm636 = vcmask 261312
    %637 = vst.msk [vmem:[#allocation2] sm:$0xff] %vm636, %v631
    %638 = vst.msk [vmem:[#allocation2 + $0x8] sm:$0xff] %vm636, %v633
    %v639 = vld [vmem:[#allocation2] sm:$0xff]
    %v640 = vld [vmem:[#allocation2 + $0x8] sm:$0xff]
    %v641 = vpack.c.bf16 %v640, %v639
    %v646 = vunpack.c.l.b16 %v69
    %v647 = vunpack.c.l.b16 %v70
    %v648 = vunpack.c.l.b16 %v71
    %v649 = vunpack.c.l.b16 %v72
    %v650 = vpack.c.b16 %v647, %v646
    %v651 = vpack.c.b16 %v649, %v648
    %v655 = vsel %vm132, %v641, 0
    %657 = vmatpush.bf16.msra.mxu0 0
    %658 = vmatpush.bf16.msra.mxu0 0
    %659 = vmatpush.bf16.msra.mxu0 0
    %660 = vmatpush.bf16.msra.mxu0 0
    %661 = vmatpush.bf16.msra.mxu0 0
    %662 = vmatpush.bf16.msra.mxu0 0
    %663 = vmatpush.bf16.msra.mxu0 %v651
    %664 = vmatpush.bf16.msra.mxu0 %v650
    %665 = vmatmul.bf16.gmra.mxu0 %v655
    %v666 = vpop.f32.mrf.mxu0
    %v667 = vadd.f32 %v91, %v666
    %v668 = vpop.f32.mrf.mxu0
    %v669 = vadd.f32 %v91, %v668
    %670 = vdwg.mxu0
    %v671 = vadd.f32 %v117, %v667
    %v672 = vadd.f32 %v118, %v669
    %v673 = vsel %vm132, %v671, 0.0
    %674 = vadd.xlane.f32.xlu0 %v673
    %v675 = vpop.xlane.xlu0 %674
    %v676 = vsel %vm132, %v672, 0.0
    %677 = vadd.xlane.f32.xlu0 %v676
    %v678 = vpop.xlane.xlu0 %677
    %v679 = vrcp.pop 32.0
    %v680 = vmul.f32 32.0, %v679
    %v681 = vsub.f32 1.0, %v680
    %v682 = vmul.f32 %v679, %v681
    %v683 = vadd.f32 %v679, %v682
    %vm684 = vweird.f32 %v679
    %v685 = vsel %vm684, %v679, %v683
    %v686 = vmul.f32 %v675, %v685
    %v687 = vmul.f32 %v678, %v685
    %v688 = vsub.f32 %v671, %v686
    %v689 = vsub.f32 %v672, %v687
    %v690 = vmul.f32 %v688, %v688
    %v691 = vmul.f32 %v689, %v689
    %v692 = vsel %vm132, %v690, 0.0
    %693 = vadd.xlane.f32.xlu0 %v692
    %v694 = vpop.xlane.xlu0 %693
    %v695 = vsel %vm132, %v691, 0.0
    %696 = vadd.xlane.f32.xlu0 %v695
    %v697 = vpop.xlane.xlu0 %696
    %v698 = vmul.f32 %v694, %v685
    %v699 = vmul.f32 %v697, %v685
    %v700 = vadd.f32 %v698, 1e-05
    %v701 = vadd.f32 %v699, 1e-05
    %v702 = vrsqrt.pop %v700
    %v703 = vmul.f32 %v702, %v700
    %v704 = vmul.f32 %v703, %v702
    %v705 = vmul.f32 0.5, %v704
    %v706 = vsub.f32 1.5, %v705
    %v707 = vmul.f32 %v702, %v706
    %vm708 = vweird.f32 %v700
    %vm709 = vweird.f32 %v702
    %vm710 = vmor %vm708, %vm709
    %v711 = vsel %vm710, %v702, %v707
    %v712 = vrsqrt.pop %v701
    %v713 = vmul.f32 %v712, %v701
    %v714 = vmul.f32 %v713, %v712
    %v715 = vmul.f32 0.5, %v714
    %v716 = vsub.f32 1.5, %v715
    %v717 = vmul.f32 %v712, %v716
    %vm718 = vweird.f32 %v701
    %vm719 = vweird.f32 %v712
    %vm720 = vmor %vm718, %vm719
    %v721 = vsel %vm720, %v712, %v717
    %v722 = vmul.f32 %v688, %v711
    %v723 = vmul.f32 %v689, %v721
    %v724 = vmul.f32 %v722, %v103
    %v725 = vmul.f32 %v723, %v103
    %v726 = vadd.f32 %v724, %v107
    %v727 = vadd.f32 %v725, %v107
    %v728 = vpack.c.bf16 %v727, %v726
    %v733 = vunpack.c.l.b16 %v73
    %v734 = vunpack.c.l.b16 %v74
    %v735 = vunpack.c.l.b16 %v75
    %v736 = vunpack.c.l.b16 %v76
    %v737 = vpack.c.b16 %v734, %v733
    %v738 = vpack.c.b16 %v736, %v735
    %v742 = vsel %vm132, %v728, 0
    %744 = vmatpush.bf16.msra.mxu0 0
    %745 = vmatpush.bf16.msra.mxu0 0
    %746 = vmatpush.bf16.msra.mxu0 0
    %747 = vmatpush.bf16.msra.mxu0 0
    %748 = vmatpush.bf16.msra.mxu0 0
    %749 = vmatpush.bf16.msra.mxu0 0
    %750 = vmatpush.bf16.msra.mxu0 %v738
    %751 = vmatpush.bf16.msra.mxu0 %v737
    %752 = vmatmul.bf16.gmra.mxu0 %v742
    %v753 = vpop.f32.mrf.mxu0
    %v754 = vadd.f32 %v95, %v753
    %v755 = vpop.f32.mrf.mxu0
    %v756 = vadd.f32 %v95, %v755
    %757 = vdwg.mxu0
    %v758 = vmax.f32 %v754, 0.0
    %v759 = vmax.f32 %v756, 0.0
    %v760 = vpack.c.bf16 %v759, %v758
    %v769 = vunpack.c.l.b16 %v77
    %v770 = vunpack.c.l.b16 %v78
    %v771 = vunpack.c.l.b16 %v79
    %v772 = vunpack.c.l.b16 %v80
    %v773 = vunpack.c.l.b16 %v81
    %v774 = vunpack.c.l.b16 %v82
    %v775 = vunpack.c.l.b16 %v83
    %v776 = vunpack.c.l.b16 %v84
    %v777 = vpack.c.b16 %v770, %v769
    %v778 = vpack.c.b16 %v772, %v771
    %v779 = vpack.c.b16 %v774, %v773
    %v780 = vpack.c.b16 %v776, %v775
    %vm785 = vcmask 523264
    %v787 = vsel %vm785, %v760, 0
    %789 = vmatpush.bf16.msra.mxu0 0
    %790 = vmatpush.bf16.msra.mxu0 0
    %791 = vmatpush.bf16.msra.mxu0 0
    %792 = vmatpush.bf16.msra.mxu0 0
    %793 = vmatpush.bf16.msra.mxu0 %v780
    %794 = vmatpush.bf16.msra.mxu0 %v779
    %795 = vmatpush.bf16.msra.mxu0 %v778
    %796 = vmatpush.bf16.msra.mxu0 %v777
    %797 = vmatmul.bf16.gmra.mxu0 %v787
    %v798 = vpop.f32.mrf.mxu0
    %v799 = vadd.f32 %v99, %v798
    %v800 = vpop.f32.mrf.mxu0
    %v801 = vadd.f32 %v99, %v800
    %802 = vdwg.mxu0
    %v803 = vadd.f32 %v726, %v799
    %v804 = vadd.f32 %v727, %v801
    %v805 = vsel %vm132, %v803, 0.0
    %806 = vadd.xlane.f32.xlu0 %v805
    %v807 = vpop.xlane.xlu0 %806
    %v808 = vsel %vm132, %v804, 0.0
    %809 = vadd.xlane.f32.xlu0 %v808
    %v810 = vpop.xlane.xlu0 %809
    %v811 = vmul.f32 %v807, %v685
    %v812 = vmul.f32 %v810, %v685
    %v813 = vsub.f32 %v803, %v811
    %v814 = vsub.f32 %v804, %v812
    %v815 = vmul.f32 %v813, %v813
    %v816 = vmul.f32 %v814, %v814
    %v817 = vsel %vm132, %v815, 0.0
    %818 = vadd.xlane.f32.xlu0 %v817
    %v819 = vpop.xlane.xlu0 %818
    %v820 = vsel %vm132, %v816, 0.0
    %821 = vadd.xlane.f32.xlu0 %v820
    %v822 = vpop.xlane.xlu0 %821
    %v823 = vmul.f32 %v819, %v685
    %v824 = vmul.f32 %v822, %v685
    %v825 = vadd.f32 %v823, 1e-05
    %v826 = vadd.f32 %v824, 1e-05
    %v827 = vrsqrt.pop %v825
    %v828 = vmul.f32 %v827, %v825
    %v829 = vmul.f32 %v828, %v827
    %v830 = vmul.f32 0.5, %v829
    %v831 = vsub.f32 1.5, %v830
    %v832 = vmul.f32 %v827, %v831
    %vm833 = vweird.f32 %v825
    %vm834 = vweird.f32 %v827
    %vm835 = vmor %vm833, %vm834
    %v836 = vsel %vm835, %v827, %v832
    %v837 = vrsqrt.pop %v826
    %v838 = vmul.f32 %v837, %v826
    %v839 = vmul.f32 %v838, %v837
    %v840 = vmul.f32 0.5, %v839
    %v841 = vsub.f32 1.5, %v840
    %v842 = vmul.f32 %v837, %v841
    %vm843 = vweird.f32 %v826
    %vm844 = vweird.f32 %v837
    %vm845 = vmor %vm843, %vm844
    %v846 = vsel %vm845, %v837, %v842
    %v847 = vmul.f32 %v813, %v836
    %v848 = vmul.f32 %v814, %v846
    %v849 = vmul.f32 %v847, %v111
    %v850 = vmul.f32 %v848, %v111
    %v851 = vadd.f32 %v849, %v115
    %v852 = vadd.f32 %v850, %v115
    %v853 = vpack.c.bf16 %v852, %v851
    %v855 = vsel %vm132, %v853, 0
    %857 = vmatpush.bf16.msra.mxu0 0
    %858 = vmatpush.bf16.msra.mxu0 0
    %859 = vmatpush.bf16.msra.mxu0 0
    %860 = vmatpush.bf16.msra.mxu0 0
    %861 = vmatpush.bf16.msra.mxu0 0
    %862 = vmatpush.bf16.msra.mxu0 0
    %863 = vmatpush.bf16.msra.mxu0 %v129
    %864 = vmatpush.bf16.msra.mxu0 %v128
    %865 = vmatmul.bf16.gmra.mxu0 %v855
    %v866 = vpop.f32.mrf.mxu0
    %v867 = vadd.f32 %v87, %v866
    %v868 = vpop.f32.mrf.mxu0
    %v869 = vadd.f32 %v87, %v868
    %870 = vdwg.mxu0
    %v871 = vpack.c.bf16 %v867, %v867
    %v872 = vpack.c.bf16 %v869, %v869
    %v874 = vunpack.c.l.b16 %v871
    %v875 = vpack.c.b16 %v874, %v874
    %876 = vrot.lane.b32.xlu0 %v875, 96
    %v877 = vpop.permute.xlu0 %876
    %v879 = vsel %vm157, %v871, 0
    %v882 = vsel %vm157, %v877, 0
    %884 = vmatpush.bf16.xpose.msra.mxu0 0
    %885 = vmatpush.bf16.xpose.msra.mxu0 0
    %886 = vmatpush.bf16.xpose.msra.mxu0 0
    %887 = vmatpush.bf16.xpose.msra.mxu0 0
    %888 = vmatpush.bf16.xpose.msra.mxu0 0
    %889 = vmatpush.bf16.xpose.msra.mxu0 0
    %890 = vmatpush.bf16.xpose.msra.mxu0 0
    %891 = vmatpush.bf16.xpose.msra.mxu0 %v882
    %892 = vmatmul.bf16.gmra.mxu0 %v879
    %v893 = vpop.f32.mrf.mxu0
    %v894 = vadd.f32 0.0, %v893
    %v895 = vpop.f32.mrf.mxu0
    %896 = vdwg.mxu0
    %v898 = vunpack.c.l.b16 %v872
    %v899 = vpack.c.b16 %v898, %v898
    %900 = vrot.lane.b32.xlu0 %v899, 96
    %v901 = vpop.permute.xlu0 %900
    %v903 = vsel %vm157, %v872, 0
    %v906 = vsel %vm157, %v901, 0
    %908 = vmatpush.bf16.xpose.msra.mxu0 0
    %909 = vmatpush.bf16.xpose.msra.mxu0 0
    %910 = vmatpush.bf16.xpose.msra.mxu0 0
    %911 = vmatpush.bf16.xpose.msra.mxu0 0
    %912 = vmatpush.bf16.xpose.msra.mxu0 0
    %913 = vmatpush.bf16.xpose.msra.mxu0 0
    %914 = vmatpush.bf16.xpose.msra.mxu0 0
    %915 = vmatpush.bf16.xpose.msra.mxu0 %v906
    %916 = vmatmul.bf16.gmra.mxu0 %v903
    %v917 = vpop.f32.mrf.mxu0
    %v918 = vadd.f32 0.0, %v917
    %v919 = vpop.f32.mrf.mxu0
    %920 = vdwg.mxu0
    %v921 = vsel %vm157, %v894, -inf
    %922 = vmax.xlane.f32.xlu0 %v921
    %v923 = vpop.xlane.xlu0 %922
    %v924 = vsel %vm157, %v918, -inf
    %925 = vmax.xlane.f32.xlu0 %v924
    %v926 = vpop.xlane.xlu0 %925
    %v927 = vsub.f32 %v894, %v923
    %v928 = vsub.f32 %v918, %v926
    %v929 = vmul.f32 %v927, 1.442695
    %v930 = vpow.pop %v929
    %v931 = vmul.f32 %v928, 1.442695
    %v932 = vpow.pop %v931
    %v933 = vsel %vm157, %v930, 0.0
    %934 = vadd.xlane.f32.xlu0 %v933
    %v935 = vpop.xlane.xlu0 %934
    %v936 = vsel %vm157, %v932, 0.0
    %937 = vadd.xlane.f32.xlu0 %v936
    %v938 = vpop.xlane.xlu0 %937
    %v939 = vrcp.pop %v935
    %v940 = vmul.f32 %v935, %v939
    %v941 = vsub.f32 1.0, %v940
    %v942 = vmul.f32 %v939, %v941
    %v943 = vadd.f32 %v939, %v942
    %vm944 = vweird.f32 %v935
    %vm945 = vweird.f32 %v939
    %vm946 = vmor %vm944, %vm945
    %v947 = vsel %vm946, %v939, %v943
    %v948 = vand.u32 2147483647, %v935
    %vm949 = vcmp.eq.f32.partialorder %v948, 8.507059e+37
    %v950 = vand.u32 %v935, 2147483648
    %v951 = vor.u32 1.1754944e-38, %v950
    %v952 = vsel %vm949, %v951, %v947
    %v953 = vmul.f32 %v930, %v952
    %v954 = vrcp.pop %v938
    %v955 = vmul.f32 %v938, %v954
    %v956 = vsub.f32 1.0, %v955
    %v957 = vmul.f32 %v954, %v956
    %v958 = vadd.f32 %v954, %v957
    %vm959 = vweird.f32 %v938
    %vm960 = vweird.f32 %v954
    %vm961 = vmor %vm959, %vm960
    %v962 = vsel %vm961, %v954, %v958
    %v963 = vand.u32 2147483647, %v938
    %vm964 = vcmp.eq.f32.partialorder %v963, 8.507059e+37
    %v965 = vand.u32 %v938, 2147483648
    %v966 = vor.u32 1.1754944e-38, %v965
    %v967 = vsel %vm964, %v966, %v962
    %v968 = vmul.f32 %v932, %v967
    %v969 = vadd.f32 %v953, 0.0
    %v970 = vadd.f32 %v968, 0.0
    %v971 = vpack.c.bf16 %v953, %v953
    %v972 = vpack.c.bf16 %v968, %v968
    %973 = vrot.lane.b32.xlu0 %v875, 64
    %v974 = vpop.permute.xlu0 %973
    %v976 = vsel %vm157, %v971, 0
    %v979 = vsel %vm230, %v974, 0
    %981 = vmatpush.bf16.msra.mxu0 0
    %982 = vmatpush.bf16.msra.mxu0 0
    %983 = vmatpush.bf16.msra.mxu0 0
    %984 = vmatpush.bf16.msra.mxu0 0
    %985 = vmatpush.bf16.msra.mxu0 0
    %986 = vmatpush.bf16.msra.mxu0 0
    %987 = vmatpush.bf16.msra.mxu0 0
    %988 = vmatpush.bf16.msra.mxu0 %v979
    %989 = vmatmul.bf16.gmra.mxu0 %v976
    %v990 = vpop.f32.mrf.mxu0
    %v991 = vadd.f32 0.0, %v990
    %v992 = vpop.f32.mrf.mxu0
    %993 = vdwg.mxu0
    %994 = vrot.lane.b32.xlu0 %v899, 64
    %v995 = vpop.permute.xlu0 %994
    %v997 = vsel %vm157, %v972, 0
    %v1000 = vsel %vm230, %v995, 0
    %1002 = vmatpush.bf16.msra.mxu0 0
    %1003 = vmatpush.bf16.msra.mxu0 0
    %1004 = vmatpush.bf16.msra.mxu0 0
    %1005 = vmatpush.bf16.msra.mxu0 0
    %1006 = vmatpush.bf16.msra.mxu0 0
    %1007 = vmatpush.bf16.msra.mxu0 0
    %1008 = vmatpush.bf16.msra.mxu0 0
    %1009 = vmatpush.bf16.msra.mxu0 %v1000
    %1010 = vmatmul.bf16.gmra.mxu0 %v997
    %v1011 = vpop.f32.mrf.mxu0
    %v1012 = vadd.f32 0.0, %v1011
    %v1013 = vpop.f32.mrf.mxu0
    %1014 = vdwg.mxu0
    %1015 = vst.msk [vmem:[#allocation2] sm:$0xff] %vm157, %v991
    %1016 = vst.msk [vmem:[#allocation2 + $0x8] sm:$0xff] %vm157, %v1012
    %1017 = vrot.lane.b32.xlu0 %v875, 120
    %v1018 = vpop.permute.xlu0 %1017
    %1019 = vrot.lane.b32.xlu0 %v875, 88
    %v1020 = vpop.permute.xlu0 %1019
    %v1022 = vsel %vm157, %v1018, 0
    %v1025 = vsel %vm157, %v1020, 0
    %1027 = vmatpush.bf16.xpose.msra.mxu0 0
    %1028 = vmatpush.bf16.xpose.msra.mxu0 0
    %1029 = vmatpush.bf16.xpose.msra.mxu0 0
    %1030 = vmatpush.bf16.xpose.msra.mxu0 0
    %1031 = vmatpush.bf16.xpose.msra.mxu0 0
    %1032 = vmatpush.bf16.xpose.msra.mxu0 0
    %1033 = vmatpush.bf16.xpose.msra.mxu0 0
    %1034 = vmatpush.bf16.xpose.msra.mxu0 %v1025
    %1035 = vmatmul.bf16.gmra.mxu0 %v1022
    %v1036 = vpop.f32.mrf.mxu0
    %v1037 = vadd.f32 0.0, %v1036
    %v1038 = vpop.f32.mrf.mxu0
    %1039 = vdwg.mxu0
    %1040 = vrot.lane.b32.xlu0 %v899, 120
    %v1041 = vpop.permute.xlu0 %1040
    %1042 = vrot.lane.b32.xlu0 %v899, 88
    %v1043 = vpop.permute.xlu0 %1042
    %v1045 = vsel %vm157, %v1041, 0
    %v1048 = vsel %vm157, %v1043, 0
    %1050 = vmatpush.bf16.xpose.msra.mxu0 0
    %1051 = vmatpush.bf16.xpose.msra.mxu0 0
    %1052 = vmatpush.bf16.xpose.msra.mxu0 0
    %1053 = vmatpush.bf16.xpose.msra.mxu0 0
    %1054 = vmatpush.bf16.xpose.msra.mxu0 0
    %1055 = vmatpush.bf16.xpose.msra.mxu0 0
    %1056 = vmatpush.bf16.xpose.msra.mxu0 0
    %1057 = vmatpush.bf16.xpose.msra.mxu0 %v1048
    %1058 = vmatmul.bf16.gmra.mxu0 %v1045
    %v1059 = vpop.f32.mrf.mxu0
    %v1060 = vadd.f32 0.0, %v1059
    %v1061 = vpop.f32.mrf.mxu0
    %1062 = vdwg.mxu0
    %v1063 = vsel %vm157, %v1037, -inf
    %1064 = vmax.xlane.f32.xlu0 %v1063
    %v1065 = vpop.xlane.xlu0 %1064
    %v1066 = vsel %vm157, %v1060, -inf
    %1067 = vmax.xlane.f32.xlu0 %v1066
    %v1068 = vpop.xlane.xlu0 %1067
    %v1069 = vsub.f32 %v1037, %v1065
    %v1070 = vsub.f32 %v1060, %v1068
    %v1071 = vmul.f32 %v1069, 1.442695
    %v1072 = vpow.pop %v1071
    %v1073 = vmul.f32 %v1070, 1.442695
    %v1074 = vpow.pop %v1073
    %v1075 = vsel %vm157, %v1072, 0.0
    %1076 = vadd.xlane.f32.xlu0 %v1075
    %v1077 = vpop.xlane.xlu0 %1076
    %v1078 = vsel %vm157, %v1074, 0.0
    %1079 = vadd.xlane.f32.xlu0 %v1078
    %v1080 = vpop.xlane.xlu0 %1079
    %v1081 = vrcp.pop %v1077
    %v1082 = vmul.f32 %v1077, %v1081
    %v1083 = vsub.f32 1.0, %v1082
    %v1084 = vmul.f32 %v1081, %v1083
    %v1085 = vadd.f32 %v1081, %v1084
    %vm1086 = vweird.f32 %v1077
    %vm1087 = vweird.f32 %v1081
    %vm1088 = vmor %vm1086, %vm1087
    %v1089 = vsel %vm1088, %v1081, %v1085
    %v1090 = vand.u32 2147483647, %v1077
    %vm1091 = vcmp.eq.f32.partialorder %v1090, 8.507059e+37
    %v1092 = vand.u32 %v1077, 2147483648
    %v1093 = vor.u32 1.1754944e-38, %v1092
    %v1094 = vsel %vm1091, %v1093, %v1089
    %v1095 = vmul.f32 %v1072, %v1094
    %v1096 = vrcp.pop %v1080
    %v1097 = vmul.f32 %v1080, %v1096
    %v1098 = vsub.f32 1.0, %v1097
    %v1099 = vmul.f32 %v1096, %v1098
    %v1100 = vadd.f32 %v1096, %v1099
    %vm1101 = vweird.f32 %v1080
    %vm1102 = vweird.f32 %v1096
    %vm1103 = vmor %vm1101, %vm1102
    %v1104 = vsel %vm1103, %v1096, %v1100
    %v1105 = vand.u32 2147483647, %v1080
    %vm1106 = vcmp.eq.f32.partialorder %v1105, 8.507059e+37
    %v1107 = vand.u32 %v1080, 2147483648
    %v1108 = vor.u32 1.1754944e-38, %v1107
    %v1109 = vsel %vm1106, %v1108, %v1104
    %v1110 = vmul.f32 %v1074, %v1109
    %v1111 = vadd.f32 %v969, %v1095
    %v1112 = vadd.f32 %v970, %v1110
    %v1113 = vpack.c.bf16 %v1095, %v1095
    %v1114 = vpack.c.bf16 %v1110, %v1110
    %1115 = vrot.lane.b32.xlu0 %v875, 56
    %v1116 = vpop.permute.xlu0 %1115
    %v1118 = vsel %vm157, %v1113, 0
    %v1121 = vsel %vm230, %v1116, 0
    %1123 = vmatpush.bf16.msra.mxu0 0
    %1124 = vmatpush.bf16.msra.mxu0 0
    %1125 = vmatpush.bf16.msra.mxu0 0
    %1126 = vmatpush.bf16.msra.mxu0 0
    %1127 = vmatpush.bf16.msra.mxu0 0
    %1128 = vmatpush.bf16.msra.mxu0 0
    %1129 = vmatpush.bf16.msra.mxu0 0
    %1130 = vmatpush.bf16.msra.mxu0 %v1121
    %1131 = vmatmul.bf16.gmra.mxu0 %v1118
    %v1132 = vpop.f32.mrf.mxu0
    %v1133 = vadd.f32 0.0, %v1132
    %v1134 = vpop.f32.mrf.mxu0
    %1135 = vdwg.mxu0
    %1136 = vrot.lane.b32.xlu0 %v899, 56
    %v1137 = vpop.permute.xlu0 %1136
    %v1139 = vsel %vm157, %v1114, 0
    %v1142 = vsel %vm230, %v1137, 0
    %1144 = vmatpush.bf16.msra.mxu0 0
    %1145 = vmatpush.bf16.msra.mxu0 0
    %1146 = vmatpush.bf16.msra.mxu0 0
    %1147 = vmatpush.bf16.msra.mxu0 0
    %1148 = vmatpush.bf16.msra.mxu0 0
    %1149 = vmatpush.bf16.msra.mxu0 0
    %1150 = vmatpush.bf16.msra.mxu0 0
    %1151 = vmatpush.bf16.msra.mxu0 %v1142
    %1152 = vmatmul.bf16.gmra.mxu0 %v1139
    %v1153 = vpop.f32.mrf.mxu0
    %v1154 = vadd.f32 0.0, %v1153
    %v1155 = vpop.f32.mrf.mxu0
    %1156 = vdwg.mxu0
    %1159 = vrot.lane.b32.xlu0 %v1133, 8
    %v1160 = vpop.permute.xlu0 %1159
    %1161 = vrot.lane.b32.xlu0 %v1154, 8
    %v1162 = vpop.permute.xlu0 %1161
    %1165 = vst.msk [vmem:[#allocation2] sm:$0xff] %vm390, %v1160
    %1166 = vst.msk [vmem:[#allocation2 + $0x8] sm:$0xff] %vm390, %v1162
    %1167 = vrot.lane.b32.xlu0 %v875, 112
    %v1168 = vpop.permute.xlu0 %1167
    %1169 = vrot.lane.b32.xlu0 %v875, 80
    %v1170 = vpop.permute.xlu0 %1169
    %v1172 = vsel %vm157, %v1168, 0
    %v1175 = vsel %vm157, %v1170, 0
    %1177 = vmatpush.bf16.xpose.msra.mxu0 0
    %1178 = vmatpush.bf16.xpose.msra.mxu0 0
    %1179 = vmatpush.bf16.xpose.msra.mxu0 0
    %1180 = vmatpush.bf16.xpose.msra.mxu0 0
    %1181 = vmatpush.bf16.xpose.msra.mxu0 0
    %1182 = vmatpush.bf16.xpose.msra.mxu0 0
    %1183 = vmatpush.bf16.xpose.msra.mxu0 0
    %1184 = vmatpush.bf16.xpose.msra.mxu0 %v1175
    %1185 = vmatmul.bf16.gmra.mxu0 %v1172
    %v1186 = vpop.f32.mrf.mxu0
    %v1187 = vadd.f32 0.0, %v1186
    %v1188 = vpop.f32.mrf.mxu0
    %1189 = vdwg.mxu0
    %1190 = vrot.lane.b32.xlu0 %v899, 112
    %v1191 = vpop.permute.xlu0 %1190
    %1192 = vrot.lane.b32.xlu0 %v899, 80
    %v1193 = vpop.permute.xlu0 %1192
    %v1195 = vsel %vm157, %v1191, 0
    %v1198 = vsel %vm157, %v1193, 0
    %1200 = vmatpush.bf16.xpose.msra.mxu0 0
    %1201 = vmatpush.bf16.xpose.msra.mxu0 0
    %1202 = vmatpush.bf16.xpose.msra.mxu0 0
    %1203 = vmatpush.bf16.xpose.msra.mxu0 0
    %1204 = vmatpush.bf16.xpose.msra.mxu0 0
    %1205 = vmatpush.bf16.xpose.msra.mxu0 0
    %1206 = vmatpush.bf16.xpose.msra.mxu0 0
    %1207 = vmatpush.bf16.xpose.msra.mxu0 %v1198
    %1208 = vmatmul.bf16.gmra.mxu0 %v1195
    %v1209 = vpop.f32.mrf.mxu0
    %v1210 = vadd.f32 0.0, %v1209
    %v1211 = vpop.f32.mrf.mxu0
    %1212 = vdwg.mxu0
    %v1213 = vsel %vm157, %v1187, -inf
    %1214 = vmax.xlane.f32.xlu0 %v1213
    %v1215 = vpop.xlane.xlu0 %1214
    %v1216 = vsel %vm157, %v1210, -inf
    %1217 = vmax.xlane.f32.xlu0 %v1216
    %v1218 = vpop.xlane.xlu0 %1217
    %v1219 = vsub.f32 %v1187, %v1215
    %v1220 = vsub.f32 %v1210, %v1218
    %v1221 = vmul.f32 %v1219, 1.442695
    %v1222 = vpow.pop %v1221
    %v1223 = vmul.f32 %v1220, 1.442695
    %v1224 = vpow.pop %v1223
    %v1225 = vsel %vm157, %v1222, 0.0
    %1226 = vadd.xlane.f32.xlu0 %v1225
    %v1227 = vpop.xlane.xlu0 %1226
    %v1228 = vsel %vm157, %v1224, 0.0
    %1229 = vadd.xlane.f32.xlu0 %v1228
    %v1230 = vpop.xlane.xlu0 %1229
    %v1231 = vrcp.pop %v1227
    %v1232 = vmul.f32 %v1227, %v1231
    %v1233 = vsub.f32 1.0, %v1232
    %v1234 = vmul.f32 %v1231, %v1233
    %v1235 = vadd.f32 %v1231, %v1234
    %vm1236 = vweird.f32 %v1227
    %vm1237 = vweird.f32 %v1231
    %vm1238 = vmor %vm1236, %vm1237
    %v1239 = vsel %vm1238, %v1231, %v1235
    %v1240 = vand.u32 2147483647, %v1227
    %vm1241 = vcmp.eq.f32.partialorder %v1240, 8.507059e+37
    %v1242 = vand.u32 %v1227, 2147483648
    %v1243 = vor.u32 1.1754944e-38, %v1242
    %v1244 = vsel %vm1241, %v1243, %v1239
    %v1245 = vmul.f32 %v1222, %v1244
    %v1246 = vrcp.pop %v1230
    %v1247 = vmul.f32 %v1230, %v1246
    %v1248 = vsub.f32 1.0, %v1247
    %v1249 = vmul.f32 %v1246, %v1248
    %v1250 = vadd.f32 %v1246, %v1249
    %vm1251 = vweird.f32 %v1230
    %vm1252 = vweird.f32 %v1246
    %vm1253 = vmor %vm1251, %vm1252
    %v1254 = vsel %vm1253, %v1246, %v1250
    %v1255 = vand.u32 2147483647, %v1230
    %vm1256 = vcmp.eq.f32.partialorder %v1255, 8.507059e+37
    %v1257 = vand.u32 %v1230, 2147483648
    %v1258 = vor.u32 1.1754944e-38, %v1257
    %v1259 = vsel %vm1256, %v1258, %v1254
    %v1260 = vmul.f32 %v1224, %v1259
    %v1261 = vadd.f32 %v1111, %v1245
    %v1262 = vadd.f32 %v1112, %v1260
    %v1263 = vpack.c.bf16 %v1245, %v1245
    %v1264 = vpack.c.bf16 %v1260, %v1260
    %1265 = vrot.lane.b32.xlu0 %v875, 48
    %v1266 = vpop.permute.xlu0 %1265
    %v1268 = vsel %vm157, %v1263, 0
    %v1271 = vsel %vm230, %v1266, 0
    %1273 = vmatpush.bf16.msra.mxu0 0
    %1274 = vmatpush.bf16.msra.mxu0 0
    %1275 = vmatpush.bf16.msra.mxu0 0
    %1276 = vmatpush.bf16.msra.mxu0 0
    %1277 = vmatpush.bf16.msra.mxu0 0
    %1278 = vmatpush.bf16.msra.mxu0 0
    %1279 = vmatpush.bf16.msra.mxu0 0
    %1280 = vmatpush.bf16.msra.mxu0 %v1271
    %1281 = vmatmul.bf16.gmra.mxu0 %v1268
    %v1282 = vpop.f32.mrf.mxu0
    %v1283 = vadd.f32 0.0, %v1282
    %v1284 = vpop.f32.mrf.mxu0
    %1285 = vdwg.mxu0
    %1286 = vrot.lane.b32.xlu0 %v899, 48
    %v1287 = vpop.permute.xlu0 %1286
    %v1289 = vsel %vm157, %v1264, 0
    %v1292 = vsel %vm230, %v1287, 0
    %1294 = vmatpush.bf16.msra.mxu0 0
    %1295 = vmatpush.bf16.msra.mxu0 0
    %1296 = vmatpush.bf16.msra.mxu0 0
    %1297 = vmatpush.bf16.msra.mxu0 0
    %1298 = vmatpush.bf16.msra.mxu0 0
    %1299 = vmatpush.bf16.msra.mxu0 0
    %1300 = vmatpush.bf16.msra.mxu0 0
    %1301 = vmatpush.bf16.msra.mxu0 %v1292
    %1302 = vmatmul.bf16.gmra.mxu0 %v1289
    %v1303 = vpop.f32.mrf.mxu0
    %v1304 = vadd.f32 0.0, %v1303
    %v1305 = vpop.f32.mrf.mxu0
    %1306 = vdwg.mxu0
    %1309 = vrot.lane.b32.xlu0 %v1283, 16
    %v1310 = vpop.permute.xlu0 %1309
    %1311 = vrot.lane.b32.xlu0 %v1304, 16
    %v1312 = vpop.permute.xlu0 %1311
    %1315 = vst.msk [vmem:[#allocation2] sm:$0xff] %vm513, %v1310
    %1316 = vst.msk [vmem:[#allocation2 + $0x8] sm:$0xff] %vm513, %v1312
    %1317 = vrot.lane.b32.xlu0 %v875, 104
    %v1318 = vpop.permute.xlu0 %1317
    %1319 = vrot.lane.b32.xlu0 %v875, 72
    %v1320 = vpop.permute.xlu0 %1319
    %v1322 = vsel %vm157, %v1318, 0
    %v1325 = vsel %vm157, %v1320, 0
    %1327 = vmatpush.bf16.xpose.msra.mxu0 0
    %1328 = vmatpush.bf16.xpose.msra.mxu0 0
    %1329 = vmatpush.bf16.xpose.msra.mxu0 0
    %1330 = vmatpush.bf16.xpose.msra.mxu0 0
    %1331 = vmatpush.bf16.xpose.msra.mxu0 0
    %1332 = vmatpush.bf16.xpose.msra.mxu0 0
    %1333 = vmatpush.bf16.xpose.msra.mxu0 0
    %1334 = vmatpush.bf16.xpose.msra.mxu0 %v1325
    %1335 = vmatmul.bf16.gmra.mxu0 %v1322
    %v1336 = vpop.f32.mrf.mxu0
    %v1337 = vadd.f32 0.0, %v1336
    %v1338 = vpop.f32.mrf.mxu0
    %1339 = vdwg.mxu0
    %1340 = vrot.lane.b32.xlu0 %v899, 104
    %v1341 = vpop.permute.xlu0 %1340
    %1342 = vrot.lane.b32.xlu0 %v899, 72
    %v1343 = vpop.permute.xlu0 %1342
    %v1345 = vsel %vm157, %v1341, 0
    %v1348 = vsel %vm157, %v1343, 0
    %1350 = vmatpush.bf16.xpose.msra.mxu0 0
    %1351 = vmatpush.bf16.xpose.msra.mxu0 0
    %1352 = vmatpush.bf16.xpose.msra.mxu0 0
    %1353 = vmatpush.bf16.xpose.msra.mxu0 0
    %1354 = vmatpush.bf16.xpose.msra.mxu0 0
    %1355 = vmatpush.bf16.xpose.msra.mxu0 0
    %1356 = vmatpush.bf16.xpose.msra.mxu0 0
    %1357 = vmatpush.bf16.xpose.msra.mxu0 %v1348
    %1358 = vmatmul.bf16.gmra.mxu0 %v1345
    %v1359 = vpop.f32.mrf.mxu0
    %v1360 = vadd.f32 0.0, %v1359
    %v1361 = vpop.f32.mrf.mxu0
    %1362 = vdwg.mxu0
    %v1363 = vsel %vm157, %v1337, -inf
    %1364 = vmax.xlane.f32.xlu0 %v1363
    %v1365 = vpop.xlane.xlu0 %1364
    %v1366 = vsel %vm157, %v1360, -inf
    %1367 = vmax.xlane.f32.xlu0 %v1366
    %v1368 = vpop.xlane.xlu0 %1367
    %v1369 = vsub.f32 %v1337, %v1365
    %v1370 = vsub.f32 %v1360, %v1368
    %v1371 = vmul.f32 %v1369, 1.442695
    %v1372 = vpow.pop %v1371
    %v1373 = vmul.f32 %v1370, 1.442695
    %v1374 = vpow.pop %v1373
    %v1375 = vsel %vm157, %v1372, 0.0
    %1376 = vadd.xlane.f32.xlu0 %v1375
    %v1377 = vpop.xlane.xlu0 %1376
    %v1378 = vsel %vm157, %v1374, 0.0
    %1379 = vadd.xlane.f32.xlu0 %v1378
    %v1380 = vpop.xlane.xlu0 %1379
    %v1381 = vrcp.pop %v1377
    %v1382 = vmul.f32 %v1377, %v1381
    %v1383 = vsub.f32 1.0, %v1382
    %v1384 = vmul.f32 %v1381, %v1383
    %v1385 = vadd.f32 %v1381, %v1384
    %vm1386 = vweird.f32 %v1377
    %vm1387 = vweird.f32 %v1381
    %vm1388 = vmor %vm1386, %vm1387
    %v1389 = vsel %vm1388, %v1381, %v1385
    %v1390 = vand.u32 2147483647, %v1377
    %vm1391 = vcmp.eq.f32.partialorder %v1390, 8.507059e+37
    %v1392 = vand.u32 %v1377, 2147483648
    %v1393 = vor.u32 1.1754944e-38, %v1392
    %v1394 = vsel %vm1391, %v1393, %v1389
    %v1395 = vmul.f32 %v1372, %v1394
    %v1396 = vrcp.pop %v1380
    %v1397 = vmul.f32 %v1380, %v1396
    %v1398 = vsub.f32 1.0, %v1397
    %v1399 = vmul.f32 %v1396, %v1398
    %v1400 = vadd.f32 %v1396, %v1399
    %vm1401 = vweird.f32 %v1380
    %vm1402 = vweird.f32 %v1396
    %vm1403 = vmor %vm1401, %vm1402
    %v1404 = vsel %vm1403, %v1396, %v1400
    %v1405 = vand.u32 2147483647, %v1380
    %vm1406 = vcmp.eq.f32.partialorder %v1405, 8.507059e+37
    %v1407 = vand.u32 %v1380, 2147483648
    %v1408 = vor.u32 1.1754944e-38, %v1407
    %v1409 = vsel %vm1406, %v1408, %v1404
    %v1410 = vmul.f32 %v1374, %v1409
    %v1411 = vadd.f32 %v1261, %v1395
    %v1412 = vadd.f32 %v1262, %v1410
    %v1413 = vpack.c.bf16 %v1395, %v1395
    %v1414 = vpack.c.bf16 %v1410, %v1410
    %1415 = vrot.lane.b32.xlu0 %v875, 40
    %v1416 = vpop.permute.xlu0 %1415
    %v1418 = vsel %vm157, %v1413, 0
    %v1421 = vsel %vm230, %v1416, 0
    %1423 = vmatpush.bf16.msra.mxu0 0
    %1424 = vmatpush.bf16.msra.mxu0 0
    %1425 = vmatpush.bf16.msra.mxu0 0
    %1426 = vmatpush.bf16.msra.mxu0 0
    %1427 = vmatpush.bf16.msra.mxu0 0
    %1428 = vmatpush.bf16.msra.mxu0 0
    %1429 = vmatpush.bf16.msra.mxu0 0
    %1430 = vmatpush.bf16.msra.mxu0 %v1421
    %1431 = vmatmul.bf16.gmra.mxu0 %v1418
    %v1432 = vpop.f32.mrf.mxu0
    %v1433 = vadd.f32 0.0, %v1432
    %v1434 = vpop.f32.mrf.mxu0
    %1435 = vdwg.mxu0
    %1436 = vrot.lane.b32.xlu0 %v899, 40
    %v1437 = vpop.permute.xlu0 %1436
    %v1439 = vsel %vm157, %v1414, 0
    %v1442 = vsel %vm230, %v1437, 0
    %1444 = vmatpush.bf16.msra.mxu0 0
    %1445 = vmatpush.bf16.msra.mxu0 0
    %1446 = vmatpush.bf16.msra.mxu0 0
    %1447 = vmatpush.bf16.msra.mxu0 0
    %1448 = vmatpush.bf16.msra.mxu0 0
    %1449 = vmatpush.bf16.msra.mxu0 0
    %1450 = vmatpush.bf16.msra.mxu0 0
    %1451 = vmatpush.bf16.msra.mxu0 %v1442
    %1452 = vmatmul.bf16.gmra.mxu0 %v1439
    %v1453 = vpop.f32.mrf.mxu0
    %v1454 = vadd.f32 0.0, %v1453
    %v1455 = vpop.f32.mrf.mxu0
    %1456 = vdwg.mxu0
    %1459 = vrot.lane.b32.xlu0 %v1433, 24
    %v1460 = vpop.permute.xlu0 %1459
    %1461 = vrot.lane.b32.xlu0 %v1454, 24
    %v1462 = vpop.permute.xlu0 %1461
    %1465 = vst.msk [vmem:[#allocation2] sm:$0xff] %vm636, %v1460
    %1466 = vst.msk [vmem:[#allocation2 + $0x8] sm:$0xff] %vm636, %v1462
    %v1467 = vld [vmem:[#allocation2] sm:$0xff]
    %v1468 = vld [vmem:[#allocation2 + $0x8] sm:$0xff]
    %v1469 = vpack.c.bf16 %v1468, %v1467
    %v1471 = vsel %vm132, %v1469, 0
    %1473 = vmatpush.bf16.msra.mxu0 0
    %1474 = vmatpush.bf16.msra.mxu0 0
    %1475 = vmatpush.bf16.msra.mxu0 0
    %1476 = vmatpush.bf16.msra.mxu0 0
    %1477 = vmatpush.bf16.msra.mxu0 0
    %1478 = vmatpush.bf16.msra.mxu0 0
    %1479 = vmatpush.bf16.msra.mxu0 %v651
    %1480 = vmatpush.bf16.msra.mxu0 %v650
    %1481 = vmatmul.bf16.gmra.mxu0 %v1471
    %v1482 = vpop.f32.mrf.mxu0
    %v1483 = vadd.f32 %v91, %v1482
    %v1484 = vpop.f32.mrf.mxu0
    %v1485 = vadd.f32 %v91, %v1484
    %1486 = vdwg.mxu0
    %v1487 = vadd.f32 %v851, %v1483
    %v1488 = vadd.f32 %v852, %v1485
    %v1489 = vsel %vm132, %v1487, 0.0
    %1490 = vadd.xlane.f32.xlu0 %v1489
    %v1491 = vpop.xlane.xlu0 %1490
    %v1492 = vsel %vm132, %v1488, 0.0
    %1493 = vadd.xlane.f32.xlu0 %v1492
    %v1494 = vpop.xlane.xlu0 %1493
    %v1495 = vmul.f32 %v1491, %v685
    %v1496 = vmul.f32 %v1494, %v685
    %v1497 = vsub.f32 %v1487, %v1495
    %v1498 = vsub.f32 %v1488, %v1496
    %v1499 = vmul.f32 %v1497, %v1497
    %v1500 = vmul.f32 %v1498, %v1498
    %v1501 = vsel %vm132, %v1499, 0.0
    %1502 = vadd.xlane.f32.xlu0 %v1501
    %v1503 = vpop.xlane.xlu0 %1502
    %v1504 = vsel %vm132, %v1500, 0.0
    %1505 = vadd.xlane.f32.xlu0 %v1504
    %v1506 = vpop.xlane.xlu0 %1505
    %v1507 = vmul.f32 %v1503, %v685
    %v1508 = vmul.f32 %v1506, %v685
    %v1509 = vadd.f32 %v1507, 1e-05
    %v1510 = vadd.f32 %v1508, 1e-05
    %v1511 = vrsqrt.pop %v1509
    %v1512 = vmul.f32 %v1511, %v1509
    %v1513 = vmul.f32 %v1512, %v1511
    %v1514 = vmul.f32 0.5, %v1513
    %v1515 = vsub.f32 1.5, %v1514
    %v1516 = vmul.f32 %v1511, %v1515
    %vm1517 = vweird.f32 %v1509
    %vm1518 = vweird.f32 %v1511
    %vm1519 = vmor %vm1517, %vm1518
    %v1520 = vsel %vm1519, %v1511, %v1516
    %v1521 = vrsqrt.pop %v1510
    %v1522 = vmul.f32 %v1521, %v1510
    %v1523 = vmul.f32 %v1522, %v1521
    %v1524 = vmul.f32 0.5, %v1523
    %v1525 = vsub.f32 1.5, %v1524
    %v1526 = vmul.f32 %v1521, %v1525
    %vm1527 = vweird.f32 %v1510
    %vm1528 = vweird.f32 %v1521
    %vm1529 = vmor %vm1527, %vm1528
    %v1530 = vsel %vm1529, %v1521, %v1526
    %v1531 = vmul.f32 %v1497, %v1520
    %v1532 = vmul.f32 %v1498, %v1530
    %v1533 = vmul.f32 %v1531, %v103
    %v1534 = vmul.f32 %v1532, %v103
    %v1535 = vadd.f32 %v1533, %v107
    %v1536 = vadd.f32 %v1534, %v107
    %v1537 = vpack.c.bf16 %v1536, %v1535
    %v1539 = vsel %vm132, %v1537, 0
    %1541 = vmatpush.bf16.msra.mxu0 0
    %1542 = vmatpush.bf16.msra.mxu0 0
    %1543 = vmatpush.bf16.msra.mxu0 0
    %1544 = vmatpush.bf16.msra.mxu0 0
    %1545 = vmatpush.bf16.msra.mxu0 0
    %1546 = vmatpush.bf16.msra.mxu0 0
    %1547 = vmatpush.bf16.msra.mxu0 %v738
    %1548 = vmatpush.bf16.msra.mxu0 %v737
    %1549 = vmatmul.bf16.gmra.mxu0 %v1539
    %v1550 = vpop.f32.mrf.mxu0
    %v1551 = vadd.f32 %v95, %v1550
    %v1552 = vpop.f32.mrf.mxu0
    %v1553 = vadd.f32 %v95, %v1552
    %1554 = vdwg.mxu0
    %v1555 = vmax.f32 %v1551, 0.0
    %v1556 = vmax.f32 %v1553, 0.0
    %v1557 = vpack.c.bf16 %v1556, %v1555
    %v1559 = vsel %vm785, %v1557, 0
    %1561 = vmatpush.bf16.msra.mxu0 0
    %1562 = vmatpush.bf16.msra.mxu0 0
    %1563 = vmatpush.bf16.msra.mxu0 0
    %1564 = vmatpush.bf16.msra.mxu0 0
    %1565 = vmatpush.bf16.msra.mxu0 %v780
    %1566 = vmatpush.bf16.msra.mxu0 %v779
    %1567 = vmatpush.bf16.msra.mxu0 %v778
    %1568 = vmatpush.bf16.msra.mxu0 %v777
    %1569 = vmatmul.bf16.gmra.mxu0 %v1559
    %v1570 = vpop.f32.mrf.mxu0
    %v1571 = vadd.f32 %v99, %v1570
    %v1572 = vpop.f32.mrf.mxu0
    %v1573 = vadd.f32 %v99, %v1572
    %1574 = vdwg.mxu0
    %v1575 = vadd.f32 %v1535, %v1571
    %v1576 = vadd.f32 %v1536, %v1573
    %v1577 = vsel %vm132, %v1575, 0.0
    %1578 = vadd.xlane.f32.xlu0 %v1577
    %v1579 = vpop.xlane.xlu0 %1578
    %v1580 = vsel %vm132, %v1576, 0.0
    %1581 = vadd.xlane.f32.xlu0 %v1580
    %v1582 = vpop.xlane.xlu0 %1581
    %v1583 = vmul.f32 %v1579, %v685
    %v1584 = vmul.f32 %v1582, %v685
    %v1585 = vsub.f32 %v1575, %v1583
    %v1586 = vsub.f32 %v1576, %v1584
    %v1587 = vmul.f32 %v1585, %v1585
    %v1588 = vmul.f32 %v1586, %v1586
    %v1589 = vsel %vm132, %v1587, 0.0
    %1590 = vadd.xlane.f32.xlu0 %v1589
    %v1591 = vpop.xlane.xlu0 %1590
    %v1592 = vsel %vm132, %v1588, 0.0
    %1593 = vadd.xlane.f32.xlu0 %v1592
    %v1594 = vpop.xlane.xlu0 %1593
    %v1595 = vmul.f32 %v1591, %v685
    %v1596 = vmul.f32 %v1594, %v685
    %v1597 = vadd.f32 %v1595, 1e-05
    %v1598 = vadd.f32 %v1596, 1e-05
    %v1599 = vrsqrt.pop %v1597
    %v1600 = vmul.f32 %v1599, %v1597
    %v1601 = vmul.f32 %v1600, %v1599
    %v1602 = vmul.f32 0.5, %v1601
    %v1603 = vsub.f32 1.5, %v1602
    %v1604 = vmul.f32 %v1599, %v1603
    %vm1605 = vweird.f32 %v1597
    %vm1606 = vweird.f32 %v1599
    %vm1607 = vmor %vm1605, %vm1606
    %v1608 = vsel %vm1607, %v1599, %v1604
    %v1609 = vrsqrt.pop %v1598
    %v1610 = vmul.f32 %v1609, %v1598
    %v1611 = vmul.f32 %v1610, %v1609
    %v1612 = vmul.f32 0.5, %v1611
    %v1613 = vsub.f32 1.5, %v1612
    %v1614 = vmul.f32 %v1609, %v1613
    %vm1615 = vweird.f32 %v1598
    %vm1616 = vweird.f32 %v1609
    %vm1617 = vmor %vm1615, %vm1616
    %v1618 = vsel %vm1617, %v1609, %v1614
    %v1619 = vmul.f32 %v1585, %v1608
    %v1620 = vmul.f32 %v1586, %v1618
    %v1621 = vmul.f32 %v1619, %v111
    %v1622 = vmul.f32 %v1620, %v111
    %v1623 = vadd.f32 %v1621, %v115
    %v1624 = vadd.f32 %v1622, %v115
    %v1625 = vmul.f32 %v1411, 0.25
    %v1626 = vmul.f32 %v1412, 0.25
    %1627 = vst.msk [vmem:[#allocation6] sm:$0xff] %vm132, %v1623
    %1628 = vst.msk [vmem:[#allocation6 + $0x8] sm:$0xff] %vm132, %v1624
    %1629 = vst.msk [vmem:[#allocation7] sm:$0xff] %vm157, %v1625
    %1630 = vst.msk [vmem:[#allocation7 + $0x8] sm:$0xff] %vm157, %v1626
    // Predicated region
    $region58: #{tpu_custom_call.1} parent=1 // pred_check
      _
    $region59: #{tpu_custom_call.1} parent=1 // pred_check_branch
      %1632 = sbr.rel (0) target = $region61
    $region60: #{tpu_custom_call.1} parent=1 // pred_region
      %1634 = vsyncadd [#allocation5], 0
      %s1635 = sshll.u32 [#allocation6], 4
      %s1636 = int_to_ptr.vmem [resolvable:$true] %s1635
      %s1637 = sshll.u32 %s13, 4
      %s1638 = int_to_ptr.hbm [resolvable:$true] %s1637
      %1643 = dma.vmem_to_hbm [thread:$0]  %s1636, 256, %s1638, [#allocation5], 128, 128, 8
    $region61: #{tpu_custom_call.1} parent=1 // pred_fallthru
      _
    // Predicated region
    $region62: #{tpu_custom_call.1} parent=1 // pred_check
      _
    $region63: #{tpu_custom_call.1} parent=1 // pred_check_branch
      %1645 = sbr.rel (0) target = $region65
    $region64: #{tpu_custom_call.1} parent=1 // pred_region
      %1647 = vsyncadd [#allocation8], 0
      %s1648 = sshll.u32 [#allocation7], 4
      %s1649 = int_to_ptr.vmem [resolvable:$true] %s1648
      %s1650 = sshll.u32 %s14, 4
      %s1651 = int_to_ptr.hbm [resolvable:$true] %s1650
      %1656 = dma.vmem_to_hbm [thread:$0]  %s1649, 256, %s1651, [#allocation8], 128, 128, 8
    $region65: #{tpu_custom_call.1} parent=1 // pred_fallthru
      _
    // Predicated region
    $region66: #{tpu_custom_call.1} parent=1 // pred_check
      _
    $region67: #{tpu_custom_call.1} parent=1 // pred_check_branch
      %1658 = sbr.rel (0) target = $region69
    $region68: #{tpu_custom_call.1} parent=1 // pred_region
      %1660 = dma.done [#allocation5], 256
    $region69: #{tpu_custom_call.1} parent=1 // pred_fallthru
      _
    // Predicated region
    $region70: #{tpu_custom_call.1} parent=1 // pred_check
      _
    $region71: #{tpu_custom_call.1} parent=1 // pred_check_branch
      %1662 = sbr.rel (0) target = $region73
    $region72: #{tpu_custom_call.1} parent=1 // pred_region
      %1664 = dma.done [#allocation8], 256
    $region73: #{tpu_custom_call.1} parent=1 // pred_fallthru
      _
    %1665 = vsyncpa [#allocation4], 1
    %1666 = vsyncpa [#allocation5], 1
    %1667 = vsyncpa [#allocation8], 1

</llo_original>
